<compile_context>
chip_gen: v6e
topology: v6e:2x2x1
jax: 0.10.0
libtpu: 0.0.40
codegen_flags: <defaults>
</compile_context>

<pallas_src>
import functools

import jax
import jax.numpy as jnp
import numpy as np
from jax import lax
from jax.experimental import pallas as pl
from jax.experimental.pallas import tpu as pltpu

_DILATIONS = (1, 2, 5)


def _dilated_net_kernel(x_ref, w_ref, m_ref, o_ref, pad_ref, col_ref,
                        *, H, W, pad):
    C = x_ref.shape[1]
    HW = H * W
    K = col_ref.shape[0]
    nine_c = 9 * C

    # Zero only the halo strips; the centre is fully rewritten every layer.
    pad_ref[:, :pad] = jnp.zeros((C, pad), jnp.float32)
    pad_ref[:, pad + HW:] = jnp.zeros((C, pad), jnp.float32)

    # Constant tail of the im2col stack: zero padding rows, with a ones-row at
    # row 9*C that picks up the bias column of the packed weight in the matmul.
    col_ref[nine_c:, :] = jnp.zeros((K - nine_c, HW), jnp.float32)
    col_ref[nine_c:nine_c + 1, :] = jnp.ones((1, HW), jnp.float32)

    x0 = x_ref[0]                                   # (C, HW) f32
    cur = x0
    for layer, d in enumerate(_DILATIONS):
        # Current activation into the centre of the zero-haloed flat scratch.
        pad_ref[:, pad:pad + HW] = cur
        # im2col: 9 statically-shifted windows, each multiplied by its
        # precomputed row&column validity mask (the combined mask also kills
        # the corner aliasing cases where a row overflow plus a column wrap
        # lands back inside the valid flat range).
        for kh in range(3):
            for kw in range(3):
                t = kh * 3 + kw
                s = (kh - 1) * d * W + (kw - 1) * d
                win = pad_ref[:, pad + s:pad + s + HW]
                col_ref[t * C:(t + 1) * C, :] = win * m_ref[layer * 9 + t]
        # One MXU contraction per layer: (C, K) @ (K, HW); bias comes for free
        # through the ones-row / bias-column.
        cur = jnp.dot(w_ref[layer], col_ref[...],
                      preferred_element_type=jnp.float32)
    o_ref[0] = (x0 + cur).astype(o_ref.dtype)       # residual add


def _build_masks(H, W):
    """{0,1} f32 validity mask per (layer, tap) over the flat spatial axis."""
    HW = H * W
    flat = np.arange(HW)
    hh, ww = flat // W, flat % W
    m = np.zeros((len(_DILATIONS) * 9, 1, HW), np.float32)
    for li, d in enumerate(_DILATIONS):
        for kh in range(3):
            for kw in range(3):
                dh, dw = (kh - 1) * d, (kw - 1) * d
                valid = ((hh + dh >= 0) & (hh + dh < H) &
                         (ww + dw >= 0) & (ww + dw < W))
                m[li * 9 + kh * 3 + kw, 0, :] = valid
    return m


@jax.jit
def three_layer_dilated_conv_net(x_nchw, w1, b1, w2, b2, w3, b3):
    """x: (N, C, H, W); conv weights in PyTorch OIHW (C, C, 3, 3); biases (C,)."""
    N, C, H, W = x_nchw.shape
    HW = H * W
    dmax = max(_DILATIONS)
    pad = ((dmax * W + dmax + 127) // 128) * 128     # flat halo, lane-aligned
    K = ((9 * C + 1 + 7) // 8) * 8                   # im2col rows (+ bias row)

    x_flat = x_nchw.reshape(N, C, HW).astype(jnp.float32)   # contiguous reshape

    def prep_wb(w, b):
        # OIHW -> (C_out, K): column (kh*3+kw)*C + c_in holds w[o, i, kh, kw];
        # column 9*C holds the bias; remaining columns are zero.
        assert w.shape == (C, C, 3, 3) and b.shape == (C,)
        wt = jnp.transpose(w, (0, 2, 3, 1)).reshape(C, 9 * C)
        wk = jnp.zeros((C, K), jnp.float32)
        wk = wk.at[:, :9 * C].set(wt.astype(jnp.float32))
        wk = wk.at[:, 9 * C].set(b.astype(jnp.float32))
        return wk

    w_all = jnp.stack([prep_wb(w1, b1), prep_wb(w2, b2), prep_wb(w3, b3)])
    masks = jnp.asarray(_build_masks(H, W))          # baked compile-time constant

    kernel = functools.partial(_dilated_net_kernel, H=H, W=W, pad=pad)

    out_flat = pl.pallas_call(
        kernel,
        out_shape=jax.ShapeDtypeStruct((N, C, HW), jnp.float32),
        grid_spec=pltpu.PrefetchScalarGridSpec(
            num_scalar_prefetch=0,
            grid=(N,),
            in_specs=[
                pl.BlockSpec((1, C, HW), lambda n: (n, 0, 0)),
                pl.BlockSpec((len(_DILATIONS), C, K), lambda n: (0, 0, 0)),
                pl.BlockSpec((len(_DILATIONS) * 9, 1, HW),
                             lambda n: (0, 0, 0)),
            ],
            out_specs=pl.BlockSpec((1, C, HW), lambda n: (n, 0, 0)),
            scratch_shapes=[
                pltpu.VMEM((C, HW + 2 * pad), jnp.float32),   # padded activation
                pltpu.VMEM((K, HW), jnp.float32),             # im2col stack
            ],
        ),
        compiler_params=pltpu.CompilerParams(
            dimension_semantics=("parallel",),
        ),
    )(x_flat, w_all, masks)
    return out_flat.reshape(N, C, H, W)


def _reference(x, w1, b1, w2, b2, w3, b3):
    """Pure-JAX reference using lax.conv_general_dilated (NCHW / OIHW)."""
    def conv(y, w, b, d):
        o = lax.conv_general_dilated(
            y, w, window_strides=(1, 1), padding=[(d, d), (d, d)],
            rhs_dilation=(d, d),
            dimension_numbers=('NCHW', 'OIHW', 'NCHW'))
        return o + b.reshape(1, -1, 1, 1)

    x1 = conv(x, w1, b1, 1)
    x2 = conv(x1, w2, b2, 2)
    x3 = conv(x2, w3, b3, 5)
    return x + x3


if __name__ == "__main__":
    key = jax.random.PRNGKey(0)
    N, C, H, W = 2, 4, 16, 16

    k_x, k1, k2, k3, kb1, kb2, kb3 = jax.random.split(key, 7)
    x = jax.random.normal(k_x, (N, C, H, W), jnp.float32)

    # PyTorch-native parameter layouts: OIHW weights and (C,) biases.
    fan_in = C * 3 * 3
    scale = 1.0 / (fan_in ** 0.5)
    w1 = jax.random.uniform(k1, (C, C, 3, 3), jnp.float32, -scale, scale)
    w2 = jax.random.uniform(k2, (C, C, 3, 3), jnp.float32, -scale, scale)
    w3 = jax.random.uniform(k3, (C, C, 3, 3), jnp.float32, -scale, scale)
    b1 = jax.random.uniform(kb1, (C,), jnp.float32, -scale, scale)
    b2 = jax.random.uniform(kb2, (C,), jnp.float32, -scale, scale)
    b3 = jax.random.uniform(kb3, (C,), jnp.float32, -scale, scale)

    out = three_layer_dilated_conv_net(x, w1, b1, w2, b2, w3, b3)
    out = jax.block_until_ready(out)

    ref = _reference(x, w1, b1, w2, b2, w3, b3)
    assert out.shape == (N, C, H, W)
    assert jnp.allclose(out, ref, rtol=1e-4, atol=1e-4), "mismatch vs reference"

    print("KERNEL_OK")
</pallas_src>

<mosaic_0001>
module attributes {stable_mosaic.version = 11 : i64} {
  func.func @_dilated_net_kernel(%arg0: i32, %arg1: memref<1x4x256xf32, #tpu.memory_space<vmem>>, %arg2: memref<3x4x40xf32, #tpu.memory_space<vmem>>, %arg3: memref<27x1x256xf32, #tpu.memory_space<vmem>>, %arg4: memref<1x4x256xf32, #tpu.memory_space<vmem>>, %arg5: memref<4x512xf32, #tpu.memory_space<vmem>>, %arg6: memref<40x256xf32, #tpu.memory_space<vmem>>) attributes {dimension_semantics = [#tpu.dimension_semantics<parallel>], iteration_bounds = array<i64: 2>, scalar_prefetch = 0 : i64, scratch_operands = 2 : i64, tpu.core_type = #tpu.core_type<tc>, window_params = [{transform_indices = @transform_0, window_bounds = array<i64: 1, 4, 256>}, {pipeline_mode = #tpu.pipeline_mode<synchronous>, transform_indices = @transform_1, window_bounds = array<i64: 3, 4, 40>}, {pipeline_mode = #tpu.pipeline_mode<synchronous>, transform_indices = @transform_2, window_bounds = array<i64: 27, 1, 256>}, {transform_indices = @transform_3, window_bounds = array<i64: 1, 4, 256>}]} {
    %cst = arith.constant 0.000000e+00 : f32
    %0 = vector.broadcast %cst : f32 to vector<4x128xf32>
    %c0 = arith.constant 0 : index
    %c0_0 = arith.constant 0 : index
    %1 = vector.load %arg5[%c0, %c0_0] : memref<4x512xf32, #tpu.memory_space<vmem>>, vector<4x128xf32>
    tpu.vector_store %arg5[%c0, %c0_0], %0 {strides = array<i32>} : memref<4x512xf32, #tpu.memory_space<vmem>>, vector<4x128xf32>,
    %cst_1 = arith.constant 0.000000e+00 : f32
    %2 = vector.broadcast %cst_1 : f32 to vector<4x128xf32>
    %c0_2 = arith.constant 0 : index
    %c384 = arith.constant 384 : index
    %3 = vector.load %arg5[%c0_2, %c384] : memref<4x512xf32, #tpu.memory_space<vmem>>, vector<4x128xf32>
    tpu.vector_store %arg5[%c0_2, %c384], %2 {strides = array<i32>} : memref<4x512xf32, #tpu.memory_space<vmem>>, vector<4x128xf32>,
    %cst_3 = arith.constant 0.000000e+00 : f32
    %4 = vector.broadcast %cst_3 : f32 to vector<4x256xf32>
    %c36 = arith.constant 36 : index
    %c0_4 = arith.constant 0 : index
    %5 = vector.load %arg6[%c36, %c0_4] : memref<40x256xf32, #tpu.memory_space<vmem>>, vector<4x256xf32>
    tpu.vector_store %arg6[%c36, %c0_4], %4 {strides = array<i32>} : memref<40x256xf32, #tpu.memory_space<vmem>>, vector<4x256xf32>,
    %cst_5 = arith.constant 1.000000e+00 : f32
    %6 = vector.broadcast %cst_5 : f32 to vector<1x256xf32>
    %c36_6 = arith.constant 36 : index
    %c0_7 = arith.constant 0 : index
    %7 = vector.load %arg6[%c36_6, %c0_7] : memref<40x256xf32, #tpu.memory_space<vmem>>, vector<1x256xf32>
    tpu.vector_store %arg6[%c36_6, %c0_7], %6 {strides = array<i32>} : memref<40x256xf32, #tpu.memory_space<vmem>>, vector<1x256xf32>,
    %c0_8 = arith.constant 0 : index
    %c0_9 = arith.constant 0 : index
    %c0_10 = arith.constant 0 : index
    %8 = vector.load %arg1[%c0_8, %c0_9, %c0_10] : memref<1x4x256xf32, #tpu.memory_space<vmem>>, vector<1x4x256xf32>
    %9 = vector.shape_cast %8 : vector<1x4x256xf32> to vector<4x256xf32>
    %c0_11 = arith.constant 0 : index
    %c128 = arith.constant 128 : index
    %10 = vector.load %arg5[%c0_11, %c128] : memref<4x512xf32, #tpu.memory_space<vmem>>, vector<4x256xf32>
    tpu.vector_store %arg5[%c0_11, %c128], %9 {strides = array<i32>} : memref<4x512xf32, #tpu.memory_space<vmem>>, vector<4x256xf32>,
    %c0_12 = arith.constant 0 : index
    %c111 = arith.constant 111 : index
    %11 = vector.load %arg5[%c0_12, %c111] : memref<4x512xf32, #tpu.memory_space<vmem>>, vector<4x256xf32>
    %c0_13 = arith.constant 0 : index
    %c0_14 = arith.constant 0 : index
    %c0_15 = arith.constant 0 : index
    %12 = vector.load %arg3[%c0_13, %c0_14, %c0_15] : memref<27x1x256xf32, #tpu.memory_space<vmem>>, vector<1x1x256xf32>
    %13 = vector.shape_cast %12 : vector<1x1x256xf32> to vector<1x256xf32>
    %14 = vector.broadcast %13 : vector<1x256xf32> to vector<4x256xf32>
    %15 = arith.mulf %11, %14 : vector<4x256xf32>
    %c0_16 = arith.constant 0 : index
    %c0_17 = arith.constant 0 : index
    %16 = vector.load %arg6[%c0_16, %c0_17] : memref<40x256xf32, #tpu.memory_space<vmem>>, vector<4x256xf32>
    tpu.vector_store %arg6[%c0_16, %c0_17], %15 {strides = array<i32>} : memref<40x256xf32, #tpu.memory_space<vmem>>, vector<4x256xf32>,
    %c0_18 = arith.constant 0 : index
    %c112 = arith.constant 112 : index
    %17 = vector.load %arg5[%c0_18, %c112] : memref<4x512xf32, #tpu.memory_space<vmem>>, vector<4x256xf32>
    %c1 = arith.constant 1 : index
    %c0_19 = arith.constant 0 : index
    %c0_20 = arith.constant 0 : index
    %18 = vector.load %arg3[%c1, %c0_19, %c0_20] : memref<27x1x256xf32, #tpu.memory_space<vmem>>, vector<1x1x256xf32>
    %19 = vector.shape_cast %18 : vector<1x1x256xf32> to vector<1x256xf32>
    %20 = vector.broadcast %19 : vector<1x256xf32> to vector<4x256xf32>
    %21 = arith.mulf %17, %20 : vector<4x256xf32>
    %c4 = arith.constant 4 : index
    %c0_21 = arith.constant 0 : index
    %22 = vector.load %arg6[%c4, %c0_21] : memref<40x256xf32, #tpu.memory_space<vmem>>, vector<4x256xf32>
    tpu.vector_store %arg6[%c4, %c0_21], %21 {strides = array<i32>} : memref<40x256xf32, #tpu.memory_space<vmem>>, vector<4x256xf32>,
    %c0_22 = arith.constant 0 : index
    %c113 = arith.constant 113 : index
    %23 = vector.load %arg5[%c0_22, %c113] : memref<4x512xf32, #tpu.memory_space<vmem>>, vector<4x256xf32>
    %c2 = arith.constant 2 : index
    %c0_23 = arith.constant 0 : index
    %c0_24 = arith.constant 0 : index
    %24 = vector.load %arg3[%c2, %c0_23, %c0_24] : memref<27x1x256xf32, #tpu.memory_space<vmem>>, vector<1x1x256xf32>
    %25 = vector.shape_cast %24 : vector<1x1x256xf32> to vector<1x256xf32>
    %26 = vector.broadcast %25 : vector<1x256xf32> to vector<4x256xf32>
    %27 = arith.mulf %23, %26 : vector<4x256xf32>
    %c8 = arith.constant 8 : index
    %c0_25 = arith.constant 0 : index
    %28 = vector.load %arg6[%c8, %c0_25] : memref<40x256xf32, #tpu.memory_space<vmem>>, vector<4x256xf32>
    tpu.vector_store %arg6[%c8, %c0_25], %27 {strides = array<i32>} : memref<40x256xf32, #tpu.memory_space<vmem>>, vector<4x256xf32>,
    %c0_26 = arith.constant 0 : index
    %c127 = arith.constant 127 : index
    %29 = vector.load %arg5[%c0_26, %c127] : memref<4x512xf32, #tpu.memory_space<vmem>>, vector<4x256xf32>
    %c3 = arith.constant 3 : index
    %c0_27 = arith.constant 0 : index
    %c0_28 = arith.constant 0 : index
    %30 = vector.load %arg3[%c3, %c0_27, %c0_28] : memref<27x1x256xf32, #tpu.memory_space<vmem>>, vector<1x1x256xf32>
    %31 = vector.shape_cast %30 : vector<1x1x256xf32> to vector<1x256xf32>
    %32 = vector.broadcast %31 : vector<1x256xf32> to vector<4x256xf32>
    %33 = arith.mulf %29, %32 : vector<4x256xf32>
    %c12 = arith.constant 12 : index
    %c0_29 = arith.constant 0 : index
    %34 = vector.load %arg6[%c12, %c0_29] : memref<40x256xf32, #tpu.memory_space<vmem>>, vector<4x256xf32>
    tpu.vector_store %arg6[%c12, %c0_29], %33 {strides = array<i32>} : memref<40x256xf32, #tpu.memory_space<vmem>>, vector<4x256xf32>,
    %c0_30 = arith.constant 0 : index
    %c128_31 = arith.constant 128 : index
    %35 = vector.load %arg5[%c0_30, %c128_31] : memref<4x512xf32, #tpu.memory_space<vmem>>, vector<4x256xf32>
    %c4_32 = arith.constant 4 : index
    %c0_33 = arith.constant 0 : index
    %c0_34 = arith.constant 0 : index
    %36 = vector.load %arg3[%c4_32, %c0_33, %c0_34] : memref<27x1x256xf32, #tpu.memory_space<vmem>>, vector<1x1x256xf32>
    %37 = vector.shape_cast %36 : vector<1x1x256xf32> to vector<1x256xf32>
    %38 = vector.broadcast %37 : vector<1x256xf32> to vector<4x256xf32>
    %39 = arith.mulf %35, %38 : vector<4x256xf32>
    %c16 = arith.constant 16 : index
    %c0_35 = arith.constant 0 : index
    %40 = vector.load %arg6[%c16, %c0_35] : memref<40x256xf32, #tpu.memory_space<vmem>>, vector<4x256xf32>
    tpu.vector_store %arg6[%c16, %c0_35], %39 {strides = array<i32>} : memref<40x256xf32, #tpu.memory_space<vmem>>, vector<4x256xf32>,
    %c0_36 = arith.constant 0 : index
    %c129 = arith.constant 129 : index
    %41 = vector.load %arg5[%c0_36, %c129] : memref<4x512xf32, #tpu.memory_space<vmem>>, vector<4x256xf32>
    %c5 = arith.constant 5 : index
    %c0_37 = arith.constant 0 : index
    %c0_38 = arith.constant 0 : index
    %42 = vector.load %arg3[%c5, %c0_37, %c0_38] : memref<27x1x256xf32, #tpu.memory_space<vmem>>, vector<1x1x256xf32>
    %43 = vector.shape_cast %42 : vector<1x1x256xf32> to vector<1x256xf32>
    %44 = vector.broadcast %43 : vector<1x256xf32> to vector<4x256xf32>
    %45 = arith.mulf %41, %44 : vector<4x256xf32>
    %c20 = arith.constant 20 : index
    %c0_39 = arith.constant 0 : index
    %46 = vector.load %arg6[%c20, %c0_39] : memref<40x256xf32, #tpu.memory_space<vmem>>, vector<4x256xf32>
    tpu.vector_store %arg6[%c20, %c0_39], %45 {strides = array<i32>} : memref<40x256xf32, #tpu.memory_space<vmem>>, vector<4x256xf32>,
    %c0_40 = arith.constant 0 : index
    %c143 = arith.constant 143 : index
    %47 = vector.load %arg5[%c0_40, %c143] : memref<4x512xf32, #tpu.memory_space<vmem>>, vector<4x256xf32>
    %c6 = arith.constant 6 : index
    %c0_41 = arith.constant 0 : index
    %c0_42 = arith.constant 0 : index
    %48 = vector.load %arg3[%c6, %c0_41, %c0_42] : memref<27x1x256xf32, #tpu.memory_space<vmem>>, vector<1x1x256xf32>
    %49 = vector.shape_cast %48 : vector<1x1x256xf32> to vector<1x256xf32>
    %50 = vector.broadcast %49 : vector<1x256xf32> to vector<4x256xf32>
    %51 = arith.mulf %47, %50 : vector<4x256xf32>
    %c24 = arith.constant 24 : index
    %c0_43 = arith.constant 0 : index
    %52 = vector.load %arg6[%c24, %c0_43] : memref<40x256xf32, #tpu.memory_space<vmem>>, vector<4x256xf32>
    tpu.vector_store %arg6[%c24, %c0_43], %51 {strides = array<i32>} : memref<40x256xf32, #tpu.memory_space<vmem>>, vector<4x256xf32>,
    %c0_44 = arith.constant 0 : index
    %c144 = arith.constant 144 : index
    %53 = vector.load %arg5[%c0_44, %c144] : memref<4x512xf32, #tpu.memory_space<vmem>>, vector<4x256xf32>
    %c7 = arith.constant 7 : index
    %c0_45 = arith.constant 0 : index
    %c0_46 = arith.constant 0 : index
    %54 = vector.load %arg3[%c7, %c0_45, %c0_46] : memref<27x1x256xf32, #tpu.memory_space<vmem>>, vector<1x1x256xf32>
    %55 = vector.shape_cast %54 : vector<1x1x256xf32> to vector<1x256xf32>
    %56 = vector.broadcast %55 : vector<1x256xf32> to vector<4x256xf32>
    %57 = arith.mulf %53, %56 : vector<4x256xf32>
    %c28 = arith.constant 28 : index
    %c0_47 = arith.constant 0 : index
    %58 = vector.load %arg6[%c28, %c0_47] : memref<40x256xf32, #tpu.memory_space<vmem>>, vector<4x256xf32>
    tpu.vector_store %arg6[%c28, %c0_47], %57 {strides = array<i32>} : memref<40x256xf32, #tpu.memory_space<vmem>>, vector<4x256xf32>,
    %c0_48 = arith.constant 0 : index
    %c145 = arith.constant 145 : index
    %59 = vector.load %arg5[%c0_48, %c145] : memref<4x512xf32, #tpu.memory_space<vmem>>, vector<4x256xf32>
    %c8_49 = arith.constant 8 : index
    %c0_50 = arith.constant 0 : index
    %c0_51 = arith.constant 0 : index
    %60 = vector.load %arg3[%c8_49, %c0_50, %c0_51] : memref<27x1x256xf32, #tpu.memory_space<vmem>>, vector<1x1x256xf32>
    %61 = vector.shape_cast %60 : vector<1x1x256xf32> to vector<1x256xf32>
    %62 = vector.broadcast %61 : vector<1x256xf32> to vector<4x256xf32>
    %63 = arith.mulf %59, %62 : vector<4x256xf32>
    %c32 = arith.constant 32 : index
    %c0_52 = arith.constant 0 : index
    %64 = vector.load %arg6[%c32, %c0_52] : memref<40x256xf32, #tpu.memory_space<vmem>>, vector<4x256xf32>
    tpu.vector_store %arg6[%c32, %c0_52], %63 {strides = array<i32>} : memref<40x256xf32, #tpu.memory_space<vmem>>, vector<4x256xf32>,
    %c0_53 = arith.constant 0 : index
    %c0_54 = arith.constant 0 : index
    %c0_55 = arith.constant 0 : index
    %65 = vector.load %arg2[%c0_53, %c0_54, %c0_55] : memref<3x4x40xf32, #tpu.memory_space<vmem>>, vector<1x4x40xf32>
    %66 = vector.shape_cast %65 : vector<1x4x40xf32> to vector<4x40xf32>
    %c0_56 = arith.constant 0 : index
    %c0_57 = arith.constant 0 : index
    %67 = vector.load %arg6[%c0_56, %c0_57] : memref<40x256xf32, #tpu.memory_space<vmem>>, vector<40x256xf32>
    %cst_58 = arith.constant dense<0.000000e+00> : vector<4x256xf32>
    %68 = tpu.matmul %66, %67, %cst_58 {dimension_numbers = #tpu.dot_dimension_numbers<[1], [0], [0], [1], [0, 0, 1, 1], [], []>} : vector<4x40xf32>, vector<40x256xf32>, vector<4x256xf32> -> vector<4x256xf32>
    %c0_59 = arith.constant 0 : index
    %c128_60 = arith.constant 128 : index
    %69 = vector.load %arg5[%c0_59, %c128_60] : memref<4x512xf32, #tpu.memory_space<vmem>>, vector<4x256xf32>
    tpu.vector_store %arg5[%c0_59, %c128_60], %68 {strides = array<i32>} : memref<4x512xf32, #tpu.memory_space<vmem>>, vector<4x256xf32>,
    %c0_61 = arith.constant 0 : index
    %c94 = arith.constant 94 : index
    %70 = vector.load %arg5[%c0_61, %c94] : memref<4x512xf32, #tpu.memory_space<vmem>>, vector<4x256xf32>
    %c9 = arith.constant 9 : index
    %c0_62 = arith.constant 0 : index
    %c0_63 = arith.constant 0 : index
    %71 = vector.load %arg3[%c9, %c0_62, %c0_63] : memref<27x1x256xf32, #tpu.memory_space<vmem>>, vector<1x1x256xf32>
    %72 = vector.shape_cast %71 : vector<1x1x256xf32> to vector<1x256xf32>
    %73 = vector.broadcast %72 : vector<1x256xf32> to vector<4x256xf32>
    %74 = arith.mulf %70, %73 : vector<4x256xf32>
    %c0_64 = arith.constant 0 : index
    %c0_65 = arith.constant 0 : index
    %75 = vector.load %arg6[%c0_64, %c0_65] : memref<40x256xf32, #tpu.memory_space<vmem>>, vector<4x256xf32>
    tpu.vector_store %arg6[%c0_64, %c0_65], %74 {strides = array<i32>} : memref<40x256xf32, #tpu.memory_space<vmem>>, vector<4x256xf32>,
    %c0_66 = arith.constant 0 : index
    %c96 = arith.constant 96 : index
    %76 = vector.load %arg5[%c0_66, %c96] : memref<4x512xf32, #tpu.memory_space<vmem>>, vector<4x256xf32>
    %c10 = arith.constant 10 : index
    %c0_67 = arith.constant 0 : index
    %c0_68 = arith.constant 0 : index
    %77 = vector.load %arg3[%c10, %c0_67, %c0_68] : memref<27x1x256xf32, #tpu.memory_space<vmem>>, vector<1x1x256xf32>
    %78 = vector.shape_cast %77 : vector<1x1x256xf32> to vector<1x256xf32>
    %79 = vector.broadcast %78 : vector<1x256xf32> to vector<4x256xf32>
    %80 = arith.mulf %76, %79 : vector<4x256xf32>
    %c4_69 = arith.constant 4 : index
    %c0_70 = arith.constant 0 : index
    %81 = vector.load %arg6[%c4_69, %c0_70] : memref<40x256xf32, #tpu.memory_space<vmem>>, vector<4x256xf32>
    tpu.vector_store %arg6[%c4_69, %c0_70], %80 {strides = array<i32>} : memref<40x256xf32, #tpu.memory_space<vmem>>, vector<4x256xf32>,
    %c0_71 = arith.constant 0 : index
    %c98 = arith.constant 98 : index
    %82 = vector.load %arg5[%c0_71, %c98] : memref<4x512xf32, #tpu.memory_space<vmem>>, vector<4x256xf32>
    %c11 = arith.constant 11 : index
    %c0_72 = arith.constant 0 : index
    %c0_73 = arith.constant 0 : index
    %83 = vector.load %arg3[%c11, %c0_72, %c0_73] : memref<27x1x256xf32, #tpu.memory_space<vmem>>, vector<1x1x256xf32>
    %84 = vector.shape_cast %83 : vector<1x1x256xf32> to vector<1x256xf32>
    %85 = vector.broadcast %84 : vector<1x256xf32> to vector<4x256xf32>
    %86 = arith.mulf %82, %85 : vector<4x256xf32>
    %c8_74 = arith.constant 8 : index
    %c0_75 = arith.constant 0 : index
    %87 = vector.load %arg6[%c8_74, %c0_75] : memref<40x256xf32, #tpu.memory_space<vmem>>, vector<4x256xf32>
    tpu.vector_store %arg6[%c8_74, %c0_75], %86 {strides = array<i32>} : memref<40x256xf32, #tpu.memory_space<vmem>>, vector<4x256xf32>,
    %c0_76 = arith.constant 0 : index
    %c126 = arith.constant 126 : index
    %88 = vector.load %arg5[%c0_76, %c126] : memref<4x512xf32, #tpu.memory_space<vmem>>, vector<4x256xf32>
    %c12_77 = arith.constant 12 : index
    %c0_78 = arith.constant 0 : index
    %c0_79 = arith.constant 0 : index
    %89 = vector.load %arg3[%c12_77, %c0_78, %c0_79] : memref<27x1x256xf32, #tpu.memory_space<vmem>>, vector<1x1x256xf32>
    %90 = vector.shape_cast %89 : vector<1x1x256xf32> to vector<1x256xf32>
    %91 = vector.broadcast %90 : vector<1x256xf32> to vector<4x256xf32>
    %92 = arith.mulf %88, %91 : vector<4x256xf32>
    %c12_80 = arith.constant 12 : index
    %c0_81 = arith.constant 0 : index
    %93 = vector.load %arg6[%c12_80, %c0_81] : memref<40x256xf32, #tpu.memory_space<vmem>>, vector<4x256xf32>
    tpu.vector_store %arg6[%c12_80, %c0_81], %92 {strides = array<i32>} : memref<40x256xf32, #tpu.memory_space<vmem>>, vector<4x256xf32>,
    %c0_82 = arith.constant 0 : index
    %c128_83 = arith.constant 128 : index
    %94 = vector.load %arg5[%c0_82, %c128_83] : memref<4x512xf32, #tpu.memory_space<vmem>>, vector<4x256xf32>
    %c13 = arith.constant 13 : index
    %c0_84 = arith.constant 0 : index
    %c0_85 = arith.constant 0 : index
    %95 = vector.load %arg3[%c13, %c0_84, %c0_85] : memref<27x1x256xf32, #tpu.memory_space<vmem>>, vector<1x1x256xf32>
    %96 = vector.shape_cast %95 : vector<1x1x256xf32> to vector<1x256xf32>
    %97 = vector.broadcast %96 : vector<1x256xf32> to vector<4x256xf32>
    %98 = arith.mulf %94, %97 : vector<4x256xf32>
    %c16_86 = arith.constant 16 : index
    %c0_87 = arith.constant 0 : index
    %99 = vector.load %arg6[%c16_86, %c0_87] : memref<40x256xf32, #tpu.memory_space<vmem>>, vector<4x256xf32>
    tpu.vector_store %arg6[%c16_86, %c0_87], %98 {strides = array<i32>} : memref<40x256xf32, #tpu.memory_space<vmem>>, vector<4x256xf32>,
    %c0_88 = arith.constant 0 : index
    %c130 = arith.constant 130 : index
    %100 = vector.load %arg5[%c0_88, %c130] : memref<4x512xf32, #tpu.memory_space<vmem>>, vector<4x256xf32>
    %c14 = arith.constant 14 : index
    %c0_89 = arith.constant 0 : index
    %c0_90 = arith.constant 0 : index
    %101 = vector.load %arg3[%c14, %c0_89, %c0_90] : memref<27x1x256xf32, #tpu.memory_space<vmem>>, vector<1x1x256xf32>
    %102 = vector.shape_cast %101 : vector<1x1x256xf32> to vector<1x256xf32>
    %103 = vector.broadcast %102 : vector<1x256xf32> to vector<4x256xf32>
    %104 = arith.mulf %100, %103 : vector<4x256xf32>
    %c20_91 = arith.constant 20 : index
    %c0_92 = arith.constant 0 : index
    %105 = vector.load %arg6[%c20_91, %c0_92] : memref<40x256xf32, #tpu.memory_space<vmem>>, vector<4x256xf32>
    tpu.vector_store %arg6[%c20_91, %c0_92], %104 {strides = array<i32>} : memref<40x256xf32, #tpu.memory_space<vmem>>, vector<4x256xf32>,
    %c0_93 = arith.constant 0 : index
    %c158 = arith.constant 158 : index
    %106 = vector.load %arg5[%c0_93, %c158] : memref<4x512xf32, #tpu.memory_space<vmem>>, vector<4x256xf32>
    %c15 = arith.constant 15 : index
    %c0_94 = arith.constant 0 : index
    %c0_95 = arith.constant 0 : index
    %107 = vector.load %arg3[%c15, %c0_94, %c0_95] : memref<27x1x256xf32, #tpu.memory_space<vmem>>, vector<1x1x256xf32>
    %108 = vector.shape_cast %107 : vector<1x1x256xf32> to vector<1x256xf32>
    %109 = vector.broadcast %108 : vector<1x256xf32> to vector<4x256xf32>
    %110 = arith.mulf %106, %109 : vector<4x256xf32>
    %c24_96 = arith.constant 24 : index
    %c0_97 = arith.constant 0 : index
    %111 = vector.load %arg6[%c24_96, %c0_97] : memref<40x256xf32, #tpu.memory_space<vmem>>, vector<4x256xf32>
    tpu.vector_store %arg6[%c24_96, %c0_97], %110 {strides = array<i32>} : memref<40x256xf32, #tpu.memory_space<vmem>>, vector<4x256xf32>,
    %c0_98 = arith.constant 0 : index
    %c160 = arith.constant 160 : index
    %112 = vector.load %arg5[%c0_98, %c160] : memref<4x512xf32, #tpu.memory_space<vmem>>, vector<4x256xf32>
    %c16_99 = arith.constant 16 : index
    %c0_100 = arith.constant 0 : index
    %c0_101 = arith.constant 0 : index
    %113 = vector.load %arg3[%c16_99, %c0_100, %c0_101] : memref<27x1x256xf32, #tpu.memory_space<vmem>>, vector<1x1x256xf32>
    %114 = vector.shape_cast %113 : vector<1x1x256xf32> to vector<1x256xf32>
    %115 = vector.broadcast %114 : vector<1x256xf32> to vector<4x256xf32>
    %116 = arith.mulf %112, %115 : vector<4x256xf32>
    %c28_102 = arith.constant 28 : index
    %c0_103 = arith.constant 0 : index
    %117 = vector.load %arg6[%c28_102, %c0_103] : memref<40x256xf32, #tpu.memory_space<vmem>>, vector<4x256xf32>
    tpu.vector_store %arg6[%c28_102, %c0_103], %116 {strides = array<i32>} : memref<40x256xf32, #tpu.memory_space<vmem>>, vector<4x256xf32>,
    %c0_104 = arith.constant 0 : index
    %c162 = arith.constant 162 : index
    %118 = vector.load %arg5[%c0_104, %c162] : memref<4x512xf32, #tpu.memory_space<vmem>>, vector<4x256xf32>
    %c17 = arith.constant 17 : index
    %c0_105 = arith.constant 0 : index
    %c0_106 = arith.constant 0 : index
    %119 = vector.load %arg3[%c17, %c0_105, %c0_106] : memref<27x1x256xf32, #tpu.memory_space<vmem>>, vector<1x1x256xf32>
    %120 = vector.shape_cast %119 : vector<1x1x256xf32> to vector<1x256xf32>
    %121 = vector.broadcast %120 : vector<1x256xf32> to vector<4x256xf32>
    %122 = arith.mulf %118, %121 : vector<4x256xf32>
    %c32_107 = arith.constant 32 : index
    %c0_108 = arith.constant 0 : index
    %123 = vector.load %arg6[%c32_107, %c0_108] : memref<40x256xf32, #tpu.memory_space<vmem>>, vector<4x256xf32>
    tpu.vector_store %arg6[%c32_107, %c0_108], %122 {strides = array<i32>} : memref<40x256xf32, #tpu.memory_space<vmem>>, vector<4x256xf32>,
    %c1_109 = arith.constant 1 : index
    %c0_110 = arith.constant 0 : index
    %c0_111 = arith.constant 0 : index
    %124 = vector.load %arg2[%c1_109, %c0_110, %c0_111] : memref<3x4x40xf32, #tpu.memory_space<vmem>>, vector<1x4x40xf32>
    %125 = vector.shape_cast %124 : vector<1x4x40xf32> to vector<4x40xf32>
    %c0_112 = arith.constant 0 : index
    %c0_113 = arith.constant 0 : index
    %126 = vector.load %arg6[%c0_112, %c0_113] : memref<40x256xf32, #tpu.memory_space<vmem>>, vector<40x256xf32>
    %cst_114 = arith.constant dense<0.000000e+00> : vector<4x256xf32>
    %127 = tpu.matmul %125, %126, %cst_114 {dimension_numbers = #tpu.dot_dimension_numbers<[1], [0], [0], [1], [0, 0, 1, 1], [], []>} : vector<4x40xf32>, vector<40x256xf32>, vector<4x256xf32> -> vector<4x256xf32>
    %c0_115 = arith.constant 0 : index
    %c128_116 = arith.constant 128 : index
    %128 = vector.load %arg5[%c0_115, %c128_116] : memref<4x512xf32, #tpu.memory_space<vmem>>, vector<4x256xf32>
    tpu.vector_store %arg5[%c0_115, %c128_116], %127 {strides = array<i32>} : memref<4x512xf32, #tpu.memory_space<vmem>>, vector<4x256xf32>,
    %c0_117 = arith.constant 0 : index
    %c43 = arith.constant 43 : index
    %129 = vector.load %arg5[%c0_117, %c43] : memref<4x512xf32, #tpu.memory_space<vmem>>, vector<4x256xf32>
    %c18 = arith.constant 18 : index
    %c0_118 = arith.constant 0 : index
    %c0_119 = arith.constant 0 : index
    %130 = vector.load %arg3[%c18, %c0_118, %c0_119] : memref<27x1x256xf32, #tpu.memory_space<vmem>>, vector<1x1x256xf32>
    %131 = vector.shape_cast %130 : vector<1x1x256xf32> to vector<1x256xf32>
    %132 = vector.broadcast %131 : vector<1x256xf32> to vector<4x256xf32>
    %133 = arith.mulf %129, %132 : vector<4x256xf32>
    %c0_120 = arith.constant 0 : index
    %c0_121 = arith.constant 0 : index
    %134 = vector.load %arg6[%c0_120, %c0_121] : memref<40x256xf32, #tpu.memory_space<vmem>>, vector<4x256xf32>
    tpu.vector_store %arg6[%c0_120, %c0_121], %133 {strides = array<i32>} : memref<40x256xf32, #tpu.memory_space<vmem>>, vector<4x256xf32>,
    %c0_122 = arith.constant 0 : index
    %c48 = arith.constant 48 : index
    %135 = vector.load %arg5[%c0_122, %c48] : memref<4x512xf32, #tpu.memory_space<vmem>>, vector<4x256xf32>
    %c19 = arith.constant 19 : index
    %c0_123 = arith.constant 0 : index
    %c0_124 = arith.constant 0 : index
    %136 = vector.load %arg3[%c19, %c0_123, %c0_124] : memref<27x1x256xf32, #tpu.memory_space<vmem>>, vector<1x1x256xf32>
    %137 = vector.shape_cast %136 : vector<1x1x256xf32> to vector<1x256xf32>
    %138 = vector.broadcast %137 : vector<1x256xf32> to vector<4x256xf32>
    %139 = arith.mulf %135, %138 : vector<4x256xf32>
    %c4_125 = arith.constant 4 : index
    %c0_126 = arith.constant 0 : index
    %140 = vector.load %arg6[%c4_125, %c0_126] : memref<40x256xf32, #tpu.memory_space<vmem>>, vector<4x256xf32>
    tpu.vector_store %arg6[%c4_125, %c0_126], %139 {strides = array<i32>} : memref<40x256xf32, #tpu.memory_space<vmem>>, vector<4x256xf32>,
    %c0_127 = arith.constant 0 : index
    %c53 = arith.constant 53 : index
    %141 = vector.load %arg5[%c0_127, %c53] : memref<4x512xf32, #tpu.memory_space<vmem>>, vector<4x256xf32>
    %c20_128 = arith.constant 20 : index
    %c0_129 = arith.constant 0 : index
    %c0_130 = arith.constant 0 : index
    %142 = vector.load %arg3[%c20_128, %c0_129, %c0_130] : memref<27x1x256xf32, #tpu.memory_space<vmem>>, vector<1x1x256xf32>
    %143 = vector.shape_cast %142 : vector<1x1x256xf32> to vector<1x256xf32>
    %144 = vector.broadcast %143 : vector<1x256xf32> to vector<4x256xf32>
    %145 = arith.mulf %141, %144 : vector<4x256xf32>
    %c8_131 = arith.constant 8 : index
    %c0_132 = arith.constant 0 : index
    %146 = vector.load %arg6[%c8_131, %c0_132] : memref<40x256xf32, #tpu.memory_space<vmem>>, vector<4x256xf32>
    tpu.vector_store %arg6[%c8_131, %c0_132], %145 {strides = array<i32>} : memref<40x256xf32, #tpu.memory_space<vmem>>, vector<4x256xf32>,
    %c0_133 = arith.constant 0 : index
    %c123 = arith.constant 123 : index
    %147 = vector.load %arg5[%c0_133, %c123] : memref<4x512xf32, #tpu.memory_space<vmem>>, vector<4x256xf32>
    %c21 = arith.constant 21 : index
    %c0_134 = arith.constant 0 : index
    %c0_135 = arith.constant 0 : index
    %148 = vector.load %arg3[%c21, %c0_134, %c0_135] : memref<27x1x256xf32, #tpu.memory_space<vmem>>, vector<1x1x256xf32>
    %149 = vector.shape_cast %148 : vector<1x1x256xf32> to vector<1x256xf32>
    %150 = vector.broadcast %149 : vector<1x256xf32> to vector<4x256xf32>
    %151 = arith.mulf %147, %150 : vector<4x256xf32>
    %c12_136 = arith.constant 12 : index
    %c0_137 = arith.constant 0 : index
    %152 = vector.load %arg6[%c12_136, %c0_137] : memref<40x256xf32, #tpu.memory_space<vmem>>, vector<4x256xf32>
    tpu.vector_store %arg6[%c12_136, %c0_137], %151 {strides = array<i32>} : memref<40x256xf32, #tpu.memory_space<vmem>>, vector<4x256xf32>,
    %c0_138 = arith.constant 0 : index
    %c128_139 = arith.constant 128 : index
    %153 = vector.load %arg5[%c0_138, %c128_139] : memref<4x512xf32, #tpu.memory_space<vmem>>, vector<4x256xf32>
    %c22 = arith.constant 22 : index
    %c0_140 = arith.constant 0 : index
    %c0_141 = arith.constant 0 : index
    %154 = vector.load %arg3[%c22, %c0_140, %c0_141] : memref<27x1x256xf32, #tpu.memory_space<vmem>>, vector<1x1x256xf32>
    %155 = vector.shape_cast %154 : vector<1x1x256xf32> to vector<1x256xf32>
    %156 = vector.broadcast %155 : vector<1x256xf32> to vector<4x256xf32>
    %157 = arith.mulf %153, %156 : vector<4x256xf32>
    %c16_142 = arith.constant 16 : index
    %c0_143 = arith.constant 0 : index
    %158 = vector.load %arg6[%c16_142, %c0_143] : memref<40x256xf32, #tpu.memory_space<vmem>>, vector<4x256xf32>
    tpu.vector_store %arg6[%c16_142, %c0_143], %157 {strides = array<i32>} : memref<40x256xf32, #tpu.memory_space<vmem>>, vector<4x256xf32>,
    %c0_144 = arith.constant 0 : index
    %c133 = arith.constant 133 : index
    %159 = vector.load %arg5[%c0_144, %c133] : memref<4x512xf32, #tpu.memory_space<vmem>>, vector<4x256xf32>
    %c23 = arith.constant 23 : index
    %c0_145 = arith.constant 0 : index
    %c0_146 = arith.constant 0 : index
    %160 = vector.load %arg3[%c23, %c0_145, %c0_146] : memref<27x1x256xf32, #tpu.memory_space<vmem>>, vector<1x1x256xf32>
    %161 = vector.shape_cast %160 : vector<1x1x256xf32> to vector<1x256xf32>
    %162 = vector.broadcast %161 : vector<1x256xf32> to vector<4x256xf32>
    %163 = arith.mulf %159, %162 : vector<4x256xf32>
    %c20_147 = arith.constant 20 : index
    %c0_148 = arith.constant 0 : index
    %164 = vector.load %arg6[%c20_147, %c0_148] : memref<40x256xf32, #tpu.memory_space<vmem>>, vector<4x256xf32>
    tpu.vector_store %arg6[%c20_147, %c0_148], %163 {strides = array<i32>} : memref<40x256xf32, #tpu.memory_space<vmem>>, vector<4x256xf32>,
    %c0_149 = arith.constant 0 : index
    %c203 = arith.constant 203 : index
    %165 = vector.load %arg5[%c0_149, %c203] : memref<4x512xf32, #tpu.memory_space<vmem>>, vector<4x256xf32>
    %c24_150 = arith.constant 24 : index
    %c0_151 = arith.constant 0 : index
    %c0_152 = arith.constant 0 : index
    %166 = vector.load %arg3[%c24_150, %c0_151, %c0_152] : memref<27x1x256xf32, #tpu.memory_space<vmem>>, vector<1x1x256xf32>
    %167 = vector.shape_cast %166 : vector<1x1x256xf32> to vector<1x256xf32>
    %168 = vector.broadcast %167 : vector<1x256xf32> to vector<4x256xf32>
    %169 = arith.mulf %165, %168 : vector<4x256xf32>
    %c24_153 = arith.constant 24 : index
    %c0_154 = arith.constant 0 : index
    %170 = vector.load %arg6[%c24_153, %c0_154] : memref<40x256xf32, #tpu.memory_space<vmem>>, vector<4x256xf32>
    tpu.vector_store %arg6[%c24_153, %c0_154], %169 {strides = array<i32>} : memref<40x256xf32, #tpu.memory_space<vmem>>, vector<4x256xf32>,
    %c0_155 = arith.constant 0 : index
    %c208 = arith.constant 208 : index
    %171 = vector.load %arg5[%c0_155, %c208] : memref<4x512xf32, #tpu.memory_space<vmem>>, vector<4x256xf32>
    %c25 = arith.constant 25 : index
    %c0_156 = arith.constant 0 : index
    %c0_157 = arith.constant 0 : index
    %172 = vector.load %arg3[%c25, %c0_156, %c0_157] : memref<27x1x256xf32, #tpu.memory_space<vmem>>, vector<1x1x256xf32>
    %173 = vector.shape_cast %172 : vector<1x1x256xf32> to vector<1x256xf32>
    %174 = vector.broadcast %173 : vector<1x256xf32> to vector<4x256xf32>
    %175 = arith.mulf %171, %174 : vector<4x256xf32>
    %c28_158 = arith.constant 28 : index
    %c0_159 = arith.constant 0 : index
    %176 = vector.load %arg6[%c28_158, %c0_159] : memref<40x256xf32, #tpu.memory_space<vmem>>, vector<4x256xf32>
    tpu.vector_store %arg6[%c28_158, %c0_159], %175 {strides = array<i32>} : memref<40x256xf32, #tpu.memory_space<vmem>>, vector<4x256xf32>,
    %c0_160 = arith.constant 0 : index
    %c213 = arith.constant 213 : index
    %177 = vector.load %arg5[%c0_160, %c213] : memref<4x512xf32, #tpu.memory_space<vmem>>, vector<4x256xf32>
    %c26 = arith.constant 26 : index
    %c0_161 = arith.constant 0 : index
    %c0_162 = arith.constant 0 : index
    %178 = vector.load %arg3[%c26, %c0_161, %c0_162] : memref<27x1x256xf32, #tpu.memory_space<vmem>>, vector<1x1x256xf32>
    %179 = vector.shape_cast %178 : vector<1x1x256xf32> to vector<1x256xf32>
    %180 = vector.broadcast %179 : vector<1x256xf32> to vector<4x256xf32>
    %181 = arith.mulf %177, %180 : vector<4x256xf32>
    %c32_163 = arith.constant 32 : index
    %c0_164 = arith.constant 0 : index
    %182 = vector.load %arg6[%c32_163, %c0_164] : memref<40x256xf32, #tpu.memory_space<vmem>>, vector<4x256xf32>
    tpu.vector_store %arg6[%c32_163, %c0_164], %181 {strides = array<i32>} : memref<40x256xf32, #tpu.memory_space<vmem>>, vector<4x256xf32>,
    %c2_165 = arith.constant 2 : index
    %c0_166 = arith.constant 0 : index
    %c0_167 = arith.constant 0 : index
    %183 = vector.load %arg2[%c2_165, %c0_166, %c0_167] : memref<3x4x40xf32, #tpu.memory_space<vmem>>, vector<1x4x40xf32>
    %184 = vector.shape_cast %183 : vector<1x4x40xf32> to vector<4x40xf32>
    %c0_168 = arith.constant 0 : index
    %c0_169 = arith.constant 0 : index
    %185 = vector.load %arg6[%c0_168, %c0_169] : memref<40x256xf32, #tpu.memory_space<vmem>>, vector<40x256xf32>
    %cst_170 = arith.constant dense<0.000000e+00> : vector<4x256xf32>
    %186 = tpu.matmul %184, %185, %cst_170 {dimension_numbers = #tpu.dot_dimension_numbers<[1], [0], [0], [1], [0, 0, 1, 1], [], []>} : vector<4x40xf32>, vector<40x256xf32>, vector<4x256xf32> -> vector<4x256xf32>
    %187 = arith.addf %9, %186 : vector<4x256xf32>
    %c0_171 = arith.constant 0 : index
    %c0_172 = arith.constant 0 : index
    %c0_173 = arith.constant 0 : index
    %188 = vector.load %arg4[%c0_171, %c0_172, %c0_173] : memref<1x4x256xf32, #tpu.memory_space<vmem>>, vector<1x4x256xf32>
    %189 = vector.shape_cast %188 : vector<1x4x256xf32> to vector<4x256xf32>
    %190 = vector.shape_cast %187 : vector<4x256xf32> to vector<1x4x256xf32>
    tpu.vector_store %arg4[%c0_171, %c0_172, %c0_173], %190 {strides = array<i32>} : memref<1x4x256xf32, #tpu.memory_space<vmem>>, vector<1x4x256xf32>,
    return
  }
  func.func @transform_0(%arg0: i32) -> (i32, i32, i32) {
    %c0_i32 = arith.constant 0 : i32
    %c0_i32_0 = arith.constant 0 : i32
    %c0_i32_1 = arith.constant 0 : i32
    return %arg0, %c0_i32, %c0_i32_0 : i32, i32, i32
  }
  func.func @transform_1(%arg0: i32) -> (i32, i32, i32) {
    %c0_i32 = arith.constant 0 : i32
    %c0_i32_0 = arith.constant 0 : i32
    %c0_i32_1 = arith.constant 0 : i32
    %c0_i32_2 = arith.constant 0 : i32
    return %c0_i32, %c0_i32_0, %c0_i32_1 : i32, i32, i32
  }
  func.func @transform_2(%arg0: i32) -> (i32, i32, i32) {
    %c0_i32 = arith.constant 0 : i32
    %c0_i32_0 = arith.constant 0 : i32
    %c0_i32_1 = arith.constant 0 : i32
    %c0_i32_2 = arith.constant 0 : i32
    return %c0_i32, %c0_i32_0, %c0_i32_1 : i32, i32, i32
  }
  func.func @transform_3(%arg0: i32) -> (i32, i32, i32) {
    %c0_i32 = arith.constant 0 : i32
    %c0_i32_0 = arith.constant 0 : i32
    %c0_i32_1 = arith.constant 0 : i32
    return %arg0, %c0_i32, %c0_i32_0 : i32, i32, i32
  }
}

</mosaic_0001>

<llo_original>
// kernel: three_layer_dilated_conv_net.1
$region0: #{three_layer_dilated_conv_net.1}
  #allocation0 [shape = 'u32[]', space=smem, size = 0x4, offset = 0x4, fixed_abs, tag = 'smem constant byte address 0x4 - core index']
  #allocation1 [shape = 'u32[144,128]{1,0:T(1,128)}', space=vmem, size = 0x12000, scoped, tag = 'internal scratch']
  #allocation2 [shape = 'f32[4,512]{1,0:T(4,128)}', space=vmem, size = 0x2000, scoped, tag = 'scratch operand']
  #allocation3 [shape = 'f32[40,256]{1,0:T(8,128)}', space=vmem, size = 0xa000, scoped, tag = 'scratch operand']
  %s0 = inlined_call_operand.vmem [shape: f32[2,4,256], index: 0, kind: input, shape index: {}]
  %s1 = inlined_call_operand.vmem [shape: f32[3,4,40], index: 1, kind: input, shape index: {}]
  %s2 = inlined_call_operand.vmem [shape: f32[27,1,256], index: 2, kind: input, shape index: {}]
  %s3 = inlined_call_operand.vmem [shape: f32[2,4,256], index: 3, kind: output, shape index: {}]
  %s4 = sld [smem:[#allocation0]]
  $region45: #{three_layer_dilated_conv_net.1} parent=0
    _
  %s6 = ssub.s32 1, %s4
  %s7 = scalar_select 0, %s6, %s4
  loop: start=0, step=1, limit=4
  $region2: #{three_layer_dilated_conv_net.1} parent=0 // loop_pre_header
    _
  $region3: #{three_layer_dilated_conv_net.1} parent=0 // loop_header
    %s9 = sphi 0, %s13
    %p10 = scmp.ge.s32.totalorder %s9, 4
    %s19 = sphi 0, %s21
    %s22 = sphi 0, %s19
    %s23 = sphi 0, %s22
    %s39 = sphi 0, %s23
    %s43 = sphi 0, %s43
    %s45 = sphi 0, %s43
    %s46 = sphi 0, %s45
    %s60 = sphi 0, %s46
    %s64 = sphi 0, %s64
    %s66 = sphi 0, %s64
    %s67 = sphi 0, %s66
    %s81 = sphi 0, %s67
    %s87 = sphi 0, %s89
    %s90 = sphi 0, %s87
    %s91 = sphi 0, %s90
    %s107 = sphi 0, %s91
  $region4: #{three_layer_dilated_conv_net.1} parent=0 // loop_header_branch
    %12 = sbr.rel (%p10) target = $region8
  $region5: #{three_layer_dilated_conv_net.1} parent=0 // loop_body
    %s14 = ssub.s32 %s9, 1
    %s15 = ssub.s32 %s9, 2
    %s16 = sadd.s32 %s9, 1
    %s17 = ssub.s32 %s9, %s16
    %p18 = scmp.eq.s32.totalorder %s17, 0
    %s20 = sadd.s32 %s19, 1
    %s21 = scalar_select %p18, %s19, %s20
    %p24 = pneg %p18
    %p25 = scmp.eq.s32.totalorder %s9, 1
    %p26 = por %p24, %p25
    %p27 = scmp.ne.s32.totalorder %s19, %s22
    %p28 = scmp.eq.s32.totalorder %s9, 0
    %p29 = por %p27, %p28
    %p30 = scmp.ne.s32.totalorder %s19, %s22
    %p31 = scmp.eq.s32.totalorder %s14, 1
    %p32 = por %p30, %p31
    %p33 = scmp.ne.s32.totalorder %s22, %s23
    %p34 = scmp.eq.s32.totalorder %s14, 0
    %p35 = por %p33, %p34
    %p36 = scmp.ne.s32.totalorder %s22, %s23
    %p37 = scmp.eq.s32.totalorder %s15, 1
    %p38 = por %p36, %p37
    %p40 = scmp.ne.s32.totalorder %s23, %s39
    %p41 = scmp.eq.s32.totalorder %s15, 0
    %p42 = por %p40, %p41
    %s44 = sadd.s32 %s43, 1
    %p47 = scmp.eq.s32.totalorder %s9, 1
    %p48 = scmp.ne.s32.totalorder %s43, %s45
    %p49 = scmp.eq.s32.totalorder %s9, 0
    %p50 = por %p48, %p49
    %p51 = scmp.ne.s32.totalorder %s43, %s45
    %p52 = scmp.eq.s32.totalorder %s14, 1
    %p53 = por %p51, %p52
    %p54 = scmp.ne.s32.totalorder %s45, %s46
    %p55 = scmp.eq.s32.totalorder %s14, 0
    %p56 = por %p54, %p55
    %p57 = scmp.ne.s32.totalorder %s45, %s46
    %p58 = scmp.eq.s32.totalorder %s15, 1
    %p59 = por %p57, %p58
    %p61 = scmp.ne.s32.totalorder %s46, %s60
    %p62 = scmp.eq.s32.totalorder %s15, 0
    %p63 = por %p61, %p62
    %s65 = sadd.s32 %s64, 1
    %p68 = scmp.eq.s32.totalorder %s9, 1
    %p69 = scmp.ne.s32.totalorder %s64, %s66
    %p70 = scmp.eq.s32.totalorder %s9, 0
    %p71 = por %p69, %p70
    %p72 = scmp.ne.s32.totalorder %s64, %s66
    %p73 = scmp.eq.s32.totalorder %s14, 1
    %p74 = por %p72, %p73
    %p75 = scmp.ne.s32.totalorder %s66, %s67
    %p76 = scmp.eq.s32.totalorder %s14, 0
    %p77 = por %p75, %p76
    %p78 = scmp.ne.s32.totalorder %s66, %s67
    %p79 = scmp.eq.s32.totalorder %s15, 1
    %p80 = por %p78, %p79
    %p82 = scmp.ne.s32.totalorder %s67, %s81
    %p83 = scmp.eq.s32.totalorder %s15, 0
    %p84 = por %p82, %p83
    %s85 = ssub.s32 %s9, %s16
    %p86 = scmp.eq.s32.totalorder %s85, 0
    %s88 = sadd.s32 %s87, 1
    %s89 = scalar_select %p86, %s87, %s88
    %p92 = pneg %p86
    %p93 = scmp.eq.s32.totalorder %s9, 1
    %p94 = por %p92, %p93
    %p95 = scmp.ne.s32.totalorder %s87, %s90
    %p96 = scmp.eq.s32.totalorder %s9, 0
    %p97 = por %p95, %p96
    %p98 = scmp.ne.s32.totalorder %s87, %s90
    %p99 = scmp.eq.s32.totalorder %s14, 1
    %p100 = por %p98, %p99
    %p101 = scmp.ne.s32.totalorder %s90, %s91
    %p102 = scmp.eq.s32.totalorder %s14, 0
    %p103 = por %p101, %p102
    %p104 = scmp.ne.s32.totalorder %s90, %s91
    %p105 = scmp.eq.s32.totalorder %s15, 1
    %p106 = por %p104, %p105
    %p108 = scmp.ne.s32.totalorder %s91, %s107
    %p109 = scmp.eq.s32.totalorder %s15, 0
    %p110 = por %p108, %p109
    %p111 = scmp.le.s32.totalorder 1, %s9
    %p112 = scmp.lt.s32.totalorder %s9, 3
    %p113 = pnand %p111, %p112
    %p114 = pneg %p113
    // Predicated region
    $region9: #{three_layer_dilated_conv_net.1} parent=5 // pred_check
      _
    $region10: #{three_layer_dilated_conv_net.1} parent=5 // pred_check_branch
      %116 = sbr.rel (%p113) target = $region12
    $region11: #{three_layer_dilated_conv_net.1} parent=5 // pred_region
      %s117 = ssub.s32 %s9, 1
      // Predicated region
      $region13: #{three_layer_dilated_conv_net.1} parent=11 // pred_check
        %p118 = pneg %p56
      $region14: #{three_layer_dilated_conv_net.1} parent=11 // pred_check_branch
        %120 = sbr.rel (%p118) target = $region16
      $region15: #{three_layer_dilated_conv_net.1} parent=11 // pred_region
        _
      $region16: #{three_layer_dilated_conv_net.1} parent=11 // pred_fallthru
        _
      // Predicated region
      $region17: #{three_layer_dilated_conv_net.1} parent=11 // pred_check
        %p121 = pneg %p77
      $region18: #{three_layer_dilated_conv_net.1} parent=11 // pred_check_branch
        %123 = sbr.rel (%p121) target = $region20
      $region19: #{three_layer_dilated_conv_net.1} parent=11 // pred_region
        _
      $region20: #{three_layer_dilated_conv_net.1} parent=11 // pred_fallthru
        _
    $region12: #{three_layer_dilated_conv_net.1} parent=5 // pred_fallthru
      _
    %p124 = scmp.lt.s32.totalorder %s9, 2
    // Predicated region
    $region21: #{three_layer_dilated_conv_net.1} parent=5 // pred_check
      %p125 = pneg %p124
    $region22: #{three_layer_dilated_conv_net.1} parent=5 // pred_check_branch
      %127 = sbr.rel (%p125) target = $region24
    $region23: #{three_layer_dilated_conv_net.1} parent=5 // pred_region
      // Predicated region
      $region25: #{three_layer_dilated_conv_net.1} parent=23 // pred_check
        %p128 = pneg %p29
      $region26: #{three_layer_dilated_conv_net.1} parent=23 // pred_check_branch
        %130 = sbr.rel (%p128) target = $region28
      $region27: #{three_layer_dilated_conv_net.1} parent=23 // pred_region
        %p131 = scmp.lt.s32.totalorder %s9, 1
        %s132 = scalar_select %p131, %s9, 1
        %s133 = smul.addr %s132, 2
        %s134 = smul.addr %s133, 4
        %s135 = scalar_lea.vmem %s0, %s134
      $region28: #{three_layer_dilated_conv_net.1} parent=23 // pred_fallthru
        _
    $region24: #{three_layer_dilated_conv_net.1} parent=5 // pred_fallthru
      _
    %p136 = scmp.le.s32.totalorder 1, %s9
    %p137 = scmp.lt.s32.totalorder %s9, 3
    %p138 = pnand %p136, %p137
    %p139 = pneg %p138
    // Predicated region
    $region29: #{three_layer_dilated_conv_net.1} parent=5 // pred_check
      _
    $region30: #{three_layer_dilated_conv_net.1} parent=5 // pred_check_branch
      %141 = sbr.rel (%p138) target = $region32
    $region31: #{three_layer_dilated_conv_net.1} parent=5 // pred_region
      %s142 = ssub.s32 %s9, 1
      %p143 = scmp.lt.s32.totalorder %s14, 1
      %s144 = scalar_select %p143, %s14, 1
      %s145 = smul.addr %s144, 2
      %s146 = smul.addr %s145, 4
      %s147 = scalar_lea.vmem %s0, %s146
      %p148 = pneg %p35
      %p149 = pneg %p32
      %p150 = pneg %p56
      %p151 = pneg %p53
      %p152 = pneg %p77
      %p153 = pneg %p74
      %p154 = pneg %p103
      %p155 = pneg %p100
      %p156 = scmp.lt.s32.totalorder %s14, 1
      %s157 = scalar_select %p156, %s14, 1
      %s158 = smul.addr %s157, 2
      %s159 = smul.addr %s158, 4
      %s160 = scalar_lea.vmem %s3, %s159
      %p161 = scmp.lt.s32.totalorder %s14, 1
      %s162 = scalar_select %p161, %s14, 1
      %s163 = smul.addr %s162, 2
      %s164 = smul.addr %s163, 4
      %s165 = scalar_lea.vmem %s0, %s164
      %p166 = scmp.lt.s32.totalorder %s14, 1
      %s167 = scalar_select %p166, %s14, 1
      %s168 = smul.addr %s167, 2
      %s169 = smul.addr %s168, 4
      %s170 = scalar_lea.vmem %s3, %s169
      %171 = vst [vmem:[#allocation2] sm:$0xf] 0.0
      %172 = vst [vmem:[#allocation2 + $0xc] sm:$0xf] 0.0
      %173 = vst [vmem:[#allocation3 + $0x40] sm:$0xf0] 0.0
      %174 = vst [vmem:[#allocation3 + $0x48] sm:$0xf0] 0.0
      %v175 = vlaneseq
      %vm176 = vcmp.ge.s32.totalorder %v175, 0
      %vm177 = vcmp.lt.s32.totalorder %v175, 256
      %vm178 = vmand %vm176, %vm177
      %s179 = scalar_lea.vmem [#allocation3], 68
      %180 = vst.msk [vmem:[%s179] ss:$8 sm:$0x3] %vm178, 1.0
      %181 = vst.msk [vmem:[%s179] ss:$8 sm:$0x0] %vm178, 1.0
      %v182 = vld [vmem:[%s165] sm:$0xff]
      %183 = vst [vmem:[#allocation2 + $0x4] sm:$0xff] %v182
      %v184 = vld [vmem:[#allocation2] sm:$0xff]
      %v185 = vld [vmem:[#allocation2 + $0x8] sm:$0xf]
      %v186 = vld [vmem:[%s2] sm:$0x3]
      %v188 = vlaneseq
      %v189 = vshrl.u32 %v188, 7
      %v190 = vsub.s32 0, %v189
      %v191 = vrot.slane %v186, %v190
      %v192 = vlaneseq
      %v193 = vshrl.u32 %v192, 7
      %v194 = vsub.s32 1, %v193
      %v195 = vrot.slane %v186, %v194
      %v196 = vcombine.low %v191, %v195
      %197 = vrot.lane.b32.xlu0 %v196, 111
      %v198 = vpop.permute.xlu0 %197
      %v199 = vrot.slane %v198, 4
      %vm200 = vcmask 908288
      %v201 = vsel %vm200, %v199, %v198
      %v204 = vmul.f32 %v184, %v201
      %v205 = vmul.f32 %v185, %v199
      %v208 = vcombine.high %v204, %v204
      %209 = vrot.lane.b32.xlu0 %v204, 17
      %v210 = vpop.permute.xlu0 %209
      %211 = vrot.lane.b32.xlu0 %v208, 17
      %v212 = vpop.permute.xlu0 %211
      %213 = vrot.lane.b32.xlu0 %v205, 17
      %v214 = vpop.permute.xlu0 %213
      %vm215 = vcmask 138240
      %v216 = vsel %vm215, %v210, %v212
      %v217 = vsel %vm215, %v212, %v214
      %220 = vst [vmem:[#allocation3] sm:$0xf] %v216
      %221 = vst [vmem:[#allocation3 + $0x8] sm:$0xf] %v217
      %v222 = vld [vmem:[#allocation2] sm:$0xff]
      %v223 = vld [vmem:[#allocation2 + $0x8] sm:$0xf]
      %s224 = scalar_lea.vmem %s2, 2
      %v225 = vld [vmem:[%s224] sm:$0x3]
      %v227 = vlaneseq
      %v228 = vshrl.u32 %v227, 7
      %v229 = vsub.s32 0, %v228
      %v230 = vrot.slane %v225, %v229
      %v231 = vlaneseq
      %v232 = vshrl.u32 %v231, 7
      %v233 = vsub.s32 1, %v232
      %v234 = vrot.slane %v225, %v233
      %v235 = vcombine.low %v230, %v234
      %236 = vrot.lane.b32.xlu0 %v235, 112
      %v237 = vpop.permute.xlu0 %236
      %v238 = vrot.slane %v237, 4
      %vm239 = vcmask 916480
      %v240 = vsel %vm239, %v238, %v237
      %v243 = vmul.f32 %v222, %v240
      %v244 = vmul.f32 %v223, %v238
      %v247 = vcombine.low %v243, %v243
      %v248 = vcombine.low %v244, %v244
      %249 = vrot.lane.b32.xlu0 %v247, 16
      %v250 = vpop.permute.xlu0 %249
      %251 = vrot.lane.b32.xlu0 %v243, 16
      %v252 = vpop.permute.xlu0 %251
      %253 = vrot.lane.b32.xlu0 %v248, 16
      %v254 = vpop.permute.xlu0 %253
      %vm255 = vcmask 130048
      %v256 = vsel %vm255, %v250, %v252
      %v257 = vsel %vm255, %v252, %v254
      %260 = vst [vmem:[#allocation3] sm:$0xf0] %v256
      %261 = vst [vmem:[#allocation3 + $0x8] sm:$0xf0] %v257
      %v262 = vld [vmem:[#allocation2] sm:$0xff]
      %v263 = vld [vmem:[#allocation2 + $0x8] sm:$0xf]
      %s264 = scalar_lea.vmem %s2, 4
      %v265 = vld [vmem:[%s264] sm:$0x3]
      %v267 = vlaneseq
      %v268 = vshrl.u32 %v267, 7
      %v269 = vsub.s32 0, %v268
      %v270 = vrot.slane %v265, %v269
      %v271 = vlaneseq
      %v272 = vshrl.u32 %v271, 7
      %v273 = vsub.s32 1, %v272
      %v274 = vrot.slane %v265, %v273
      %v275 = vcombine.low %v270, %v274
      %276 = vrot.lane.b32.xlu0 %v275, 113
      %v277 = vpop.permute.xlu0 %276
      %v278 = vrot.slane %v277, 4
      %vm279 = vcmask 924672
      %v280 = vsel %vm279, %v278, %v277
      %v283 = vmul.f32 %v262, %v280
      %v284 = vmul.f32 %v263, %v278
      %v287 = vcombine.high %v283, %v283
      %288 = vrot.lane.b32.xlu0 %v283, 15
      %v289 = vpop.permute.xlu0 %288
      %290 = vrot.lane.b32.xlu0 %v287, 15
      %v291 = vpop.permute.xlu0 %290
      %292 = vrot.lane.b32.xlu0 %v284, 15
      %v293 = vpop.permute.xlu0 %292
      %vm294 = vcmask 121856
      %v295 = vsel %vm294, %v289, %v291
      %v296 = vsel %vm294, %v291, %v293
      %299 = vst [vmem:[#allocation3 + $0x10] sm:$0xf] %v295
      %300 = vst [vmem:[#allocation3 + $0x18] sm:$0xf] %v296
      %v301 = vld [vmem:[#allocation2] sm:$0xff]
      %v302 = vld [vmem:[#allocation2 + $0x8] sm:$0xf]
      %s303 = scalar_lea.vmem %s2, 6
      %v304 = vld [vmem:[%s303] sm:$0x3]
      %v306 = vlaneseq
      %v307 = vshrl.u32 %v306, 7
      %v308 = vsub.s32 0, %v307
      %v309 = vrot.slane %v304, %v308
      %v310 = vlaneseq
      %v311 = vshrl.u32 %v310, 7
      %v312 = vsub.s32 1, %v311
      %v313 = vrot.slane %v304, %v312
      %v314 = vcombine.low %v309, %v313
      %315 = vrot.lane.b32.xlu0 %v314, 127
      %v316 = vpop.permute.xlu0 %315
      %v317 = vrot.slane %v316, 4
      %vm318 = vcmask 1039360
      %v319 = vsel %vm318, %v317, %v316
      %v322 = vmul.f32 %v301, %v319
      %v323 = vmul.f32 %v302, %v317
      %v326 = vcombine.low %v322, %v322
      %v327 = vcombine.low %v323, %v323
      %328 = vrot.lane.b32.xlu0 %v326, 1
      %v329 = vpop.permute.xlu0 %328
      %330 = vrot.lane.b32.xlu0 %v322, 1
      %v331 = vpop.permute.xlu0 %330
      %332 = vrot.lane.b32.xlu0 %v327, 1
      %v333 = vpop.permute.xlu0 %332
      %vm334 = vcmask 7168
      %v335 = vsel %vm334, %v329, %v331
      %v336 = vsel %vm334, %v331, %v333
      %339 = vst [vmem:[#allocation3 + $0x10] sm:$0xf0] %v335
      %340 = vst [vmem:[#allocation3 + $0x18] sm:$0xf0] %v336
      %v341 = vld [vmem:[#allocation2 + $0x4] sm:$0xff]
      %s342 = scalar_lea.vmem %s2, 8
      %v343 = vld [vmem:[%s342] sm:$0x3]
      %v345 = vlaneseq
      %v346 = vshrl.u32 %v345, 7
      %v347 = vsub.s32 0, %v346
      %v348 = vrot.slane %v343, %v347
      %v349 = vlaneseq
      %v350 = vshrl.u32 %v349, 7
      %v351 = vsub.s32 1, %v350
      %v352 = vrot.slane %v343, %v351
      %v353 = vcombine.low %v348, %v352
      %v355 = vmul.f32 %v341, %v353
      %v357 = vcombine.high %v355, %v355
      %359 = vst [vmem:[#allocation3 + $0x20] sm:$0xf] %v355
      %360 = vst [vmem:[#allocation3 + $0x28] sm:$0xf] %v357
      %v361 = vld [vmem:[#allocation2 + $0x4] sm:$0xff]
      %v362 = vld [vmem:[#allocation2 + $0xc] sm:$0xf]
      %s363 = scalar_lea.vmem %s2, 10
      %v364 = vld [vmem:[%s363] sm:$0x3]
      %v366 = vlaneseq
      %v367 = vshrl.u32 %v366, 7
      %v368 = vsub.s32 0, %v367
      %v369 = vrot.slane %v364, %v368
      %v370 = vlaneseq
      %v371 = vshrl.u32 %v370, 7
      %v372 = vsub.s32 1, %v371
      %v373 = vrot.slane %v364, %v372
      %v374 = vcombine.low %v369, %v373
      %375 = vrot.lane.b32.xlu0 %v374, 1
      %v376 = vpop.permute.xlu0 %375
      %v377 = vrot.slane %v376, 4
      %v378 = vsel %vm334, %v377, %v376
      %v381 = vmul.f32 %v361, %v378
      %v382 = vmul.f32 %v362, %v377
      %v385 = vcombine.low %v381, %v381
      %v386 = vcombine.low %v382, %v382
      %387 = vrot.lane.b32.xlu0 %v385, 127
      %v388 = vpop.permute.xlu0 %387
      %389 = vrot.lane.b32.xlu0 %v381, 127
      %v390 = vpop.permute.xlu0 %389
      %391 = vrot.lane.b32.xlu0 %v386, 127
      %v392 = vpop.permute.xlu0 %391
      %v393 = vsel %vm318, %v388, %v390
      %v394 = vsel %vm318, %v390, %v392
      %397 = vst [vmem:[#allocation3 + $0x20] sm:$0xf0] %v393
      %398 = vst [vmem:[#allocation3 + $0x28] sm:$0xf0] %v394
      %v399 = vld [vmem:[#allocation2 + $0x4] sm:$0xff]
      %v400 = vld [vmem:[#allocation2 + $0xc] sm:$0xf]
      %s401 = scalar_lea.vmem %s2, 12
      %v402 = vld [vmem:[%s401] sm:$0x3]
      %v404 = vlaneseq
      %v405 = vshrl.u32 %v404, 7
      %v406 = vsub.s32 0, %v405
      %v407 = vrot.slane %v402, %v406
      %v408 = vlaneseq
      %v409 = vshrl.u32 %v408, 7
      %v410 = vsub.s32 1, %v409
      %v411 = vrot.slane %v402, %v410
      %v412 = vcombine.low %v407, %v411
      %413 = vrot.lane.b32.xlu0 %v412, 15
      %v414 = vpop.permute.xlu0 %413
      %v415 = vrot.slane %v414, 4
      %v416 = vsel %vm294, %v415, %v414
      %v419 = vmul.f32 %v399, %v416
      %v420 = vmul.f32 %v400, %v415
      %v423 = vcombine.high %v419, %v419
      %424 = vrot.lane.b32.xlu0 %v419, 113
      %v425 = vpop.permute.xlu0 %424
      %426 = vrot.lane.b32.xlu0 %v423, 113
      %v427 = vpop.permute.xlu0 %426
      %428 = vrot.lane.b32.xlu0 %v420, 113
      %v429 = vpop.permute.xlu0 %428
      %v430 = vsel %vm279, %v425, %v427
      %v431 = vsel %vm279, %v427, %v429
      %434 = vst [vmem:[#allocation3 + $0x30] sm:$0xf] %v430
      %435 = vst [vmem:[#allocation3 + $0x38] sm:$0xf] %v431
      %v436 = vld [vmem:[#allocation2 + $0x4] sm:$0xff]
      %v437 = vld [vmem:[#allocation2 + $0xc] sm:$0xf]
      %s438 = scalar_lea.vmem %s2, 14
      %v439 = vld [vmem:[%s438] sm:$0x3]
      %v441 = vlaneseq
      %v442 = vshrl.u32 %v441, 7
      %v443 = vsub.s32 0, %v442
      %v444 = vrot.slane %v439, %v443
      %v445 = vlaneseq
      %v446 = vshrl.u32 %v445, 7
      %v447 = vsub.s32 1, %v446
      %v448 = vrot.slane %v439, %v447
      %v449 = vcombine.low %v444, %v448
      %450 = vrot.lane.b32.xlu0 %v449, 16
      %v451 = vpop.permute.xlu0 %450
      %v452 = vrot.slane %v451, 4
      %v453 = vsel %vm255, %v452, %v451
      %v456 = vmul.f32 %v436, %v453
      %v457 = vmul.f32 %v437, %v452
      %v460 = vcombine.low %v456, %v456
      %v461 = vcombine.low %v457, %v457
      %462 = vrot.lane.b32.xlu0 %v460, 112
      %v463 = vpop.permute.xlu0 %462
      %464 = vrot.lane.b32.xlu0 %v456, 112
      %v465 = vpop.permute.xlu0 %464
      %466 = vrot.lane.b32.xlu0 %v461, 112
      %v467 = vpop.permute.xlu0 %466
      %v468 = vsel %vm239, %v463, %v465
      %v469 = vsel %vm239, %v465, %v467
      %472 = vst [vmem:[#allocation3 + $0x30] sm:$0xf0] %v468
      %473 = vst [vmem:[#allocation3 + $0x38] sm:$0xf0] %v469
      %v474 = vld [vmem:[#allocation2 + $0x4] sm:$0xff]
      %v475 = vld [vmem:[#allocation2 + $0xc] sm:$0xf]
      %s476 = scalar_lea.vmem %s2, 16
      %v477 = vld [vmem:[%s476] sm:$0x3]
      %v479 = vlaneseq
      %v480 = vshrl.u32 %v479, 7
      %v481 = vsub.s32 0, %v480
      %v482 = vrot.slane %v477, %v481
      %v483 = vlaneseq
      %v484 = vshrl.u32 %v483, 7
      %v485 = vsub.s32 1, %v484
      %v486 = vrot.slane %v477, %v485
      %v487 = vcombine.low %v482, %v486
      %488 = vrot.lane.b32.xlu0 %v487, 17
      %v489 = vpop.permute.xlu0 %488
      %v490 = vrot.slane %v489, 4
      %v491 = vsel %vm215, %v490, %v489
      %v494 = vmul.f32 %v474, %v491
      %v495 = vmul.f32 %v475, %v490
      %v498 = vcombine.high %v494, %v494
      %499 = vrot.lane.b32.xlu0 %v494, 111
      %v500 = vpop.permute.xlu0 %499
      %501 = vrot.lane.b32.xlu0 %v498, 111
      %v502 = vpop.permute.xlu0 %501
      %503 = vrot.lane.b32.xlu0 %v495, 111
      %v504 = vpop.permute.xlu0 %503
      %v505 = vsel %vm200, %v500, %v502
      %v506 = vsel %vm200, %v502, %v504
      %509 = vst [vmem:[#allocation3 + $0x40] sm:$0xf] %v505
      %510 = vst [vmem:[#allocation3 + $0x48] sm:$0xf] %v506
      %v511 = vld [vmem:[%s1] sm:$0xf]
      %v512 = vld [vmem:[#allocation3] sm:$0xff]
      %v513 = vld [vmem:[#allocation3 + $0x8] sm:$0xff]
      %v514 = vld [vmem:[#allocation3 + $0x10] sm:$0xff]
      %v515 = vld [vmem:[#allocation3 + $0x18] sm:$0xff]
      %v516 = vld [vmem:[#allocation3 + $0x20] sm:$0xff]
      %v517 = vld [vmem:[#allocation3 + $0x28] sm:$0xff]
      %v518 = vld [vmem:[#allocation3 + $0x30] sm:$0xff]
      %v519 = vld [vmem:[#allocation3 + $0x38] sm:$0xff]
      %v520 = vld [vmem:[#allocation3 + $0x40] sm:$0xff]
      %v521 = vld [vmem:[#allocation3 + $0x48] sm:$0xff]
      %vm522 = vcmask 326656
      %v524 = vsel %vm522, %v511, 0
      %526 = vmatprep.subr.mxu0 0.0
      %527 = vmatpush1.msra.mxu0 0.0
      %528 = vmatprep.subr.mxu0 0.0
      %529 = vmatpush1.msra.mxu0 0.0
      %530 = vmatprep.subr.mxu0 0.0
      %531 = vmatpush1.msra.mxu0 0.0
      %532 = vmatprep.subr.mxu0 0.0
      %533 = vmatpush1.msra.mxu0 0.0
      %534 = vmatprep.subr.mxu0 0.0
      %535 = vmatpush1.msra.mxu0 0.0
      %536 = vmatprep.subr.mxu0 0.0
      %537 = vmatpush1.msra.mxu0 0.0
      %538 = vmatprep.subr.mxu0 0.0
      %539 = vmatpush1.msra.mxu0 0.0
      %540 = vmatprep.subr.mxu0 0.0
      %541 = vmatpush1.msra.mxu0 0.0
      %542 = vmatprep.subr.mxu0 0.0
      %543 = vmatpush1.msra.mxu0 0.0
      %544 = vmatprep.subr.mxu0 0.0
      %545 = vmatpush1.msra.mxu0 0.0
      %546 = vmatprep.subr.mxu0 0.0
      %547 = vmatpush1.msra.mxu0 0.0
      %548 = vmatprep.subr.mxu0 %v521
      %549 = vmatpush1.msra.mxu0 %v520
      %550 = vmatprep.subr.mxu0 %v519
      %551 = vmatpush1.msra.mxu0 %v518
      %552 = vmatprep.subr.mxu0 %v517
      %553 = vmatpush1.msra.mxu0 %v516
      %554 = vmatprep.subr.mxu0 %v515
      %555 = vmatpush1.msra.mxu0 %v514
      %556 = vmatprep.subr.mxu0 %v513
      %557 = vmatpush1.msra.mxu0 %v512
      %558 = vmatprep.subr.mxu0 0.0
      %559 = vmatpush2.msra.mxu0 0.0
      %560 = vmatprep.subr.mxu0 0.0
      %561 = vmatpush2.msra.mxu0 0.0
      %562 = vmatprep.subr.mxu0 0.0
      %563 = vmatpush2.msra.mxu0 0.0
      %564 = vmatprep.subr.mxu0 0.0
      %565 = vmatpush2.msra.mxu0 0.0
      %566 = vmatprep.subr.mxu0 0.0
      %567 = vmatpush2.msra.mxu0 0.0
      %568 = vmatprep.subr.mxu0 0.0
      %569 = vmatpush2.msra.mxu0 0.0
      %570 = vmatprep.subr.mxu0 0.0
      %571 = vmatpush2.msra.mxu0 0.0
      %572 = vmatprep.subr.mxu0 0.0
      %573 = vmatpush2.msra.mxu0 0.0
      %574 = vmatprep.subr.mxu0 0.0
      %575 = vmatpush2.msra.mxu0 0.0
      %576 = vmatprep.subr.mxu0 0.0
      %577 = vmatpush2.msra.mxu0 0.0
      %578 = vmatprep.subr.mxu0 0.0
      %579 = vmatpush2.msra.mxu0 0.0
      %580 = vmatprep.subr.mxu0 0.0
      %581 = vmatpush2.msra.mxu0 0.0
      %582 = vmatprep.subr.mxu0 0.0
      %583 = vmatpush2.msra.mxu0 0.0
      %584 = vmatprep.subr.mxu0 0.0
      %585 = vmatpush2.msra.mxu0 0.0
      %586 = vmatprep.subr.mxu0 0.0
      %587 = vmatpush2.msra.mxu0 0.0
      %588 = vmatprep.subr.mxu0 0.0
      %589 = vmatpush2.msra.mxu0 0.0
      %590 = vmatprep.mubr.f32.mxu0 0.0
      %591 = vmatmul.mubr.f32.gmra.mxu0 %v524
      %v592 = vpop.f32.mrf.mxu0
      %v593 = vadd.f32 0.0, %v592
      %v594 = vpop.f32.mrf.mxu0
      %v595 = vadd.f32 0.0, %v594
      %596 = vdwg.mxu0
      %v599 = vcombine.low %v593, %v595
      %601 = vst [vmem:[#allocation2 + $0x4] sm:$0xff] %v599
      %v602 = vld [vmem:[#allocation2] sm:$0xff]
      %v603 = vld [vmem:[#allocation2 + $0x8] sm:$0xf]
      %s604 = scalar_lea.vmem %s2, 18
      %v605 = vld [vmem:[%s604] sm:$0x3]
      %v607 = vlaneseq
      %v608 = vshrl.u32 %v607, 7
      %v609 = vsub.s32 0, %v608
      %v610 = vrot.slane %v605, %v609
      %v611 = vlaneseq
      %v612 = vshrl.u32 %v611, 7
      %v613 = vsub.s32 1, %v612
      %v614 = vrot.slane %v605, %v613
      %v615 = vcombine.low %v610, %v614
      %616 = vrot.lane.b32.xlu0 %v615, 94
      %v617 = vpop.permute.xlu0 %616
      %v618 = vrot.slane %v617, 4
      %vm619 = vcmask 769024
      %v620 = vsel %vm619, %v618, %v617
      %v623 = vmul.f32 %v602, %v620
      %v624 = vmul.f32 %v603, %v618
      %v627 = vcombine.high %v623, %v623
      %628 = vrot.lane.b32.xlu0 %v623, 34
      %v629 = vpop.permute.xlu0 %628
      %630 = vrot.lane.b32.xlu0 %v627, 34
      %v631 = vpop.permute.xlu0 %630
      %632 = vrot.lane.b32.xlu0 %v624, 34
      %v633 = vpop.permute.xlu0 %632
      %vm634 = vcmask 277504
      %v635 = vsel %vm634, %v629, %v631
      %v636 = vsel %vm634, %v631, %v633
      %639 = vst [vmem:[#allocation3] sm:$0xf] %v635
      %640 = vst [vmem:[#allocation3 + $0x8] sm:$0xf] %v636
      %v641 = vld [vmem:[#allocation2] sm:$0xff]
      %v642 = vld [vmem:[#allocation2 + $0x8] sm:$0xf]
      %s643 = scalar_lea.vmem %s2, 20
      %v644 = vld [vmem:[%s643] sm:$0x3]
      %v646 = vlaneseq
      %v647 = vshrl.u32 %v646, 7
      %v648 = vsub.s32 0, %v647
      %v649 = vrot.slane %v644, %v648
      %v650 = vlaneseq
      %v651 = vshrl.u32 %v650, 7
      %v652 = vsub.s32 1, %v651
      %v653 = vrot.slane %v644, %v652
      %v654 = vcombine.low %v649, %v653
      %655 = vrot.lane.b32.xlu0 %v654, 96
      %v656 = vpop.permute.xlu0 %655
      %v657 = vrot.slane %v656, 4
      %vm658 = vcmask 785408
      %v659 = vsel %vm658, %v657, %v656
      %v662 = vmul.f32 %v641, %v659
      %v663 = vmul.f32 %v642, %v657
      %v666 = vcombine.low %v662, %v662
      %v667 = vcombine.low %v663, %v663
      %668 = vrot.lane.b32.xlu0 %v666, 32
      %v669 = vpop.permute.xlu0 %668
      %670 = vrot.lane.b32.xlu0 %v662, 32
      %v671 = vpop.permute.xlu0 %670
      %672 = vrot.lane.b32.xlu0 %v667, 32
      %v673 = vpop.permute.xlu0 %672
      %vm674 = vcmask 261120
      %v675 = vsel %vm674, %v669, %v671
      %v676 = vsel %vm674, %v671, %v673
      %679 = vst [vmem:[#allocation3] sm:$0xf0] %v675
      %680 = vst [vmem:[#allocation3 + $0x8] sm:$0xf0] %v676
      %v681 = vld [vmem:[#allocation2] sm:$0xff]
      %v682 = vld [vmem:[#allocation2 + $0x8] sm:$0xf]
      %s683 = scalar_lea.vmem %s2, 22
      %v684 = vld [vmem:[%s683] sm:$0x3]
      %v686 = vlaneseq
      %v687 = vshrl.u32 %v686, 7
      %v688 = vsub.s32 0, %v687
      %v689 = vrot.slane %v684, %v688
      %v690 = vlaneseq
      %v691 = vshrl.u32 %v690, 7
      %v692 = vsub.s32 1, %v691
      %v693 = vrot.slane %v684, %v692
      %v694 = vcombine.low %v689, %v693
      %695 = vrot.lane.b32.xlu0 %v694, 98
      %v696 = vpop.permute.xlu0 %695
      %v697 = vrot.slane %v696, 4
      %vm698 = vcmask 801792
      %v699 = vsel %vm698, %v697, %v696
      %v702 = vmul.f32 %v681, %v699
      %v703 = vmul.f32 %v682, %v697
      %v706 = vcombine.high %v702, %v702
      %707 = vrot.lane.b32.xlu0 %v702, 30
      %v708 = vpop.permute.xlu0 %707
      %709 = vrot.lane.b32.xlu0 %v706, 30
      %v710 = vpop.permute.xlu0 %709
      %711 = vrot.lane.b32.xlu0 %v703, 30
      %v712 = vpop.permute.xlu0 %711
      %vm713 = vcmask 244736
      %v714 = vsel %vm713, %v708, %v710
      %v715 = vsel %vm713, %v710, %v712
      %718 = vst [vmem:[#allocation3 + $0x10] sm:$0xf] %v714
      %719 = vst [vmem:[#allocation3 + $0x18] sm:$0xf] %v715
      %v720 = vld [vmem:[#allocation2] sm:$0xff]
      %v721 = vld [vmem:[#allocation2 + $0x8] sm:$0xf]
      %s722 = scalar_lea.vmem %s2, 24
      %v723 = vld [vmem:[%s722] sm:$0x3]
      %v725 = vlaneseq
      %v726 = vshrl.u32 %v725, 7
      %v727 = vsub.s32 0, %v726
      %v728 = vrot.slane %v723, %v727
      %v729 = vlaneseq
      %v730 = vshrl.u32 %v729, 7
      %v731 = vsub.s32 1, %v730
      %v732 = vrot.slane %v723, %v731
      %v733 = vcombine.low %v728, %v732
      %734 = vrot.lane.b32.xlu0 %v733, 126
      %v735 = vpop.permute.xlu0 %734
      %v736 = vrot.slane %v735, 4
      %vm737 = vcmask 1031168
      %v738 = vsel %vm737, %v736, %v735
      %v741 = vmul.f32 %v720, %v738
      %v742 = vmul.f32 %v721, %v736
      %v745 = vcombine.low %v741, %v741
      %v746 = vcombine.low %v742, %v742
      %747 = vrot.lane.b32.xlu0 %v745, 2
      %v748 = vpop.permute.xlu0 %747
      %749 = vrot.lane.b32.xlu0 %v741, 2
      %v750 = vpop.permute.xlu0 %749
      %751 = vrot.lane.b32.xlu0 %v746, 2
      %v752 = vpop.permute.xlu0 %751
      %vm753 = vcmask 15360
      %v754 = vsel %vm753, %v748, %v750
      %v755 = vsel %vm753, %v750, %v752
      %758 = vst [vmem:[#allocation3 + $0x10] sm:$0xf0] %v754
      %759 = vst [vmem:[#allocation3 + $0x18] sm:$0xf0] %v755
      %v760 = vld [vmem:[#allocation2 + $0x4] sm:$0xff]
      %s761 = scalar_lea.vmem %s2, 26
      %v762 = vld [vmem:[%s761] sm:$0x3]
      %v764 = vlaneseq
      %v765 = vshrl.u32 %v764, 7
      %v766 = vsub.s32 0, %v765
      %v767 = vrot.slane %v762, %v766
      %v768 = vlaneseq
      %v769 = vshrl.u32 %v768, 7
      %v770 = vsub.s32 1, %v769
      %v771 = vrot.slane %v762, %v770
      %v772 = vcombine.low %v767, %v771
      %v774 = vmul.f32 %v760, %v772
      %v776 = vcombine.high %v774, %v774
      %778 = vst [vmem:[#allocation3 + $0x20] sm:$0xf] %v774
      %779 = vst [vmem:[#allocation3 + $0x28] sm:$0xf] %v776
      %v780 = vld [vmem:[#allocation2 + $0x4] sm:$0xff]
      %v781 = vld [vmem:[#allocation2 + $0xc] sm:$0xf]
      %s782 = scalar_lea.vmem %s2, 28
      %v783 = vld [vmem:[%s782] sm:$0x3]
      %v785 = vlaneseq
      %v786 = vshrl.u32 %v785, 7
      %v787 = vsub.s32 0, %v786
      %v788 = vrot.slane %v783, %v787
      %v789 = vlaneseq
      %v790 = vshrl.u32 %v789, 7
      %v791 = vsub.s32 1, %v790
      %v792 = vrot.slane %v783, %v791
      %v793 = vcombine.low %v788, %v792
      %794 = vrot.lane.b32.xlu0 %v793, 2
      %v795 = vpop.permute.xlu0 %794
      %v796 = vrot.slane %v795, 4
      %v797 = vsel %vm753, %v796, %v795
      %v800 = vmul.f32 %v780, %v797
      %v801 = vmul.f32 %v781, %v796
      %v804 = vcombine.low %v800, %v800
      %v805 = vcombine.low %v801, %v801
      %806 = vrot.lane.b32.xlu0 %v804, 126
      %v807 = vpop.permute.xlu0 %806
      %808 = vrot.lane.b32.xlu0 %v800, 126
      %v809 = vpop.permute.xlu0 %808
      %810 = vrot.lane.b32.xlu0 %v805, 126
      %v811 = vpop.permute.xlu0 %810
      %v812 = vsel %vm737, %v807, %v809
      %v813 = vsel %vm737, %v809, %v811
      %816 = vst [vmem:[#allocation3 + $0x20] sm:$0xf0] %v812
      %817 = vst [vmem:[#allocation3 + $0x28] sm:$0xf0] %v813
      %v818 = vld [vmem:[#allocation2 + $0x4] sm:$0xff]
      %v819 = vld [vmem:[#allocation2 + $0xc] sm:$0xf]
      %s820 = scalar_lea.vmem %s2, 30
      %v821 = vld [vmem:[%s820] sm:$0x3]
      %v823 = vlaneseq
      %v824 = vshrl.u32 %v823, 7
      %v825 = vsub.s32 0, %v824
      %v826 = vrot.slane %v821, %v825
      %v827 = vlaneseq
      %v828 = vshrl.u32 %v827, 7
      %v829 = vsub.s32 1, %v828
      %v830 = vrot.slane %v821, %v829
      %v831 = vcombine.low %v826, %v830
      %832 = vrot.lane.b32.xlu0 %v831, 30
      %v833 = vpop.permute.xlu0 %832
      %v834 = vrot.slane %v833, 4
      %v835 = vsel %vm713, %v834, %v833
      %v838 = vmul.f32 %v818, %v835
      %v839 = vmul.f32 %v819, %v834
      %v842 = vcombine.high %v838, %v838
      %843 = vrot.lane.b32.xlu0 %v838, 98
      %v844 = vpop.permute.xlu0 %843
      %845 = vrot.lane.b32.xlu0 %v842, 98
      %v846 = vpop.permute.xlu0 %845
      %847 = vrot.lane.b32.xlu0 %v839, 98
      %v848 = vpop.permute.xlu0 %847
      %v849 = vsel %vm698, %v844, %v846
      %v850 = vsel %vm698, %v846, %v848
      %853 = vst [vmem:[#allocation3 + $0x30] sm:$0xf] %v849
      %854 = vst [vmem:[#allocation3 + $0x38] sm:$0xf] %v850
      %v855 = vld [vmem:[#allocation2 + $0x4] sm:$0xff]
      %v856 = vld [vmem:[#allocation2 + $0xc] sm:$0xf]
      %s857 = scalar_lea.vmem %s2, 32
      %v858 = vld [vmem:[%s857] sm:$0x3]
      %v860 = vlaneseq
      %v861 = vshrl.u32 %v860, 7
      %v862 = vsub.s32 0, %v861
      %v863 = vrot.slane %v858, %v862
      %v864 = vlaneseq
      %v865 = vshrl.u32 %v864, 7
      %v866 = vsub.s32 1, %v865
      %v867 = vrot.slane %v858, %v866
      %v868 = vcombine.low %v863, %v867
      %869 = vrot.lane.b32.xlu0 %v868, 32
      %v870 = vpop.permute.xlu0 %869
      %v871 = vrot.slane %v870, 4
      %v872 = vsel %vm674, %v871, %v870
      %v875 = vmul.f32 %v855, %v872
      %v876 = vmul.f32 %v856, %v871
      %v879 = vcombine.low %v875, %v875
      %v880 = vcombine.low %v876, %v876
      %881 = vrot.lane.b32.xlu0 %v879, 96
      %v882 = vpop.permute.xlu0 %881
      %883 = vrot.lane.b32.xlu0 %v875, 96
      %v884 = vpop.permute.xlu0 %883
      %885 = vrot.lane.b32.xlu0 %v880, 96
      %v886 = vpop.permute.xlu0 %885
      %v887 = vsel %vm658, %v882, %v884
      %v888 = vsel %vm658, %v884, %v886
      %891 = vst [vmem:[#allocation3 + $0x30] sm:$0xf0] %v887
      %892 = vst [vmem:[#allocation3 + $0x38] sm:$0xf0] %v888
      %v893 = vld [vmem:[#allocation2 + $0x4] sm:$0xff]
      %v894 = vld [vmem:[#allocation2 + $0xc] sm:$0xf]
      %s895 = scalar_lea.vmem %s2, 34
      %v896 = vld [vmem:[%s895] sm:$0x3]
      %v898 = vlaneseq
      %v899 = vshrl.u32 %v898, 7
      %v900 = vsub.s32 0, %v899
      %v901 = vrot.slane %v896, %v900
      %v902 = vlaneseq
      %v903 = vshrl.u32 %v902, 7
      %v904 = vsub.s32 1, %v903
      %v905 = vrot.slane %v896, %v904
      %v906 = vcombine.low %v901, %v905
      %907 = vrot.lane.b32.xlu0 %v906, 34
      %v908 = vpop.permute.xlu0 %907
      %v909 = vrot.slane %v908, 4
      %v910 = vsel %vm634, %v909, %v908
      %v913 = vmul.f32 %v893, %v910
      %v914 = vmul.f32 %v894, %v909
      %v917 = vcombine.high %v913, %v913
      %918 = vrot.lane.b32.xlu0 %v913, 94
      %v919 = vpop.permute.xlu0 %918
      %920 = vrot.lane.b32.xlu0 %v917, 94
      %v921 = vpop.permute.xlu0 %920
      %922 = vrot.lane.b32.xlu0 %v914, 94
      %v923 = vpop.permute.xlu0 %922
      %v924 = vsel %vm619, %v919, %v921
      %v925 = vsel %vm619, %v921, %v923
      %928 = vst [vmem:[#allocation3 + $0x40] sm:$0xf] %v924
      %929 = vst [vmem:[#allocation3 + $0x48] sm:$0xf] %v925
      %s930 = scalar_lea.vmem %s1, 4
      %v931 = vld [vmem:[%s930] sm:$0xf]
      %v932 = vld [vmem:[#allocation3] sm:$0xff]
      %v933 = vld [vmem:[#allocation3 + $0x8] sm:$0xff]
      %v934 = vld [vmem:[#allocation3 + $0x10] sm:$0xff]
      %v935 = vld [vmem:[#allocation3 + $0x18] sm:$0xff]
      %v936 = vld [vmem:[#allocation3 + $0x20] sm:$0xff]
      %v937 = vld [vmem:[#allocation3 + $0x28] sm:$0xff]
      %v938 = vld [vmem:[#allocation3 + $0x30] sm:$0xff]
      %v939 = vld [vmem:[#allocation3 + $0x38] sm:$0xff]
      %v940 = vld [vmem:[#allocation3 + $0x40] sm:$0xff]
      %v941 = vld [vmem:[#allocation3 + $0x48] sm:$0xff]
      %v943 = vsel %vm522, %v931, 0
      %945 = vmatprep.subr.mxu0 0.0
      %946 = vmatpush1.msra.mxu0 0.0
      %947 = vmatprep.subr.mxu0 0.0
      %948 = vmatpush1.msra.mxu0 0.0
      %949 = vmatprep.subr.mxu0 0.0
      %950 = vmatpush1.msra.mxu0 0.0
      %951 = vmatprep.subr.mxu0 0.0
      %952 = vmatpush1.msra.mxu0 0.0
      %953 = vmatprep.subr.mxu0 0.0
      %954 = vmatpush1.msra.mxu0 0.0
      %955 = vmatprep.subr.mxu0 0.0
      %956 = vmatpush1.msra.mxu0 0.0
      %957 = vmatprep.subr.mxu0 0.0
      %958 = vmatpush1.msra.mxu0 0.0
      %959 = vmatprep.subr.mxu0 0.0
      %960 = vmatpush1.msra.mxu0 0.0
      %961 = vmatprep.subr.mxu0 0.0
      %962 = vmatpush1.msra.mxu0 0.0
      %963 = vmatprep.subr.mxu0 0.0
      %964 = vmatpush1.msra.mxu0 0.0
      %965 = vmatprep.subr.mxu0 0.0
      %966 = vmatpush1.msra.mxu0 0.0
      %967 = vmatprep.subr.mxu0 %v941
      %968 = vmatpush1.msra.mxu0 %v940
      %969 = vmatprep.subr.mxu0 %v939
      %970 = vmatpush1.msra.mxu0 %v938
      %971 = vmatprep.subr.mxu0 %v937
      %972 = vmatpush1.msra.mxu0 %v936
      %973 = vmatprep.subr.mxu0 %v935
      %974 = vmatpush1.msra.mxu0 %v934
      %975 = vmatprep.subr.mxu0 %v933
      %976 = vmatpush1.msra.mxu0 %v932
      %977 = vmatprep.subr.mxu0 0.0
      %978 = vmatpush2.msra.mxu0 0.0
      %979 = vmatprep.subr.mxu0 0.0
      %980 = vmatpush2.msra.mxu0 0.0
      %981 = vmatprep.subr.mxu0 0.0
      %982 = vmatpush2.msra.mxu0 0.0
      %983 = vmatprep.subr.mxu0 0.0
      %984 = vmatpush2.msra.mxu0 0.0
      %985 = vmatprep.subr.mxu0 0.0
      %986 = vmatpush2.msra.mxu0 0.0
      %987 = vmatprep.subr.mxu0 0.0
      %988 = vmatpush2.msra.mxu0 0.0
      %989 = vmatprep.subr.mxu0 0.0
      %990 = vmatpush2.msra.mxu0 0.0
      %991 = vmatprep.subr.mxu0 0.0
      %992 = vmatpush2.msra.mxu0 0.0
      %993 = vmatprep.subr.mxu0 0.0
      %994 = vmatpush2.msra.mxu0 0.0
      %995 = vmatprep.subr.mxu0 0.0
      %996 = vmatpush2.msra.mxu0 0.0
      %997 = vmatprep.subr.mxu0 0.0
      %998 = vmatpush2.msra.mxu0 0.0
      %999 = vmatprep.subr.mxu0 0.0
      %1000 = vmatpush2.msra.mxu0 0.0
      %1001 = vmatprep.subr.mxu0 0.0
      %1002 = vmatpush2.msra.mxu0 0.0
      %1003 = vmatprep.subr.mxu0 0.0
      %1004 = vmatpush2.msra.mxu0 0.0
      %1005 = vmatprep.subr.mxu0 0.0
      %1006 = vmatpush2.msra.mxu0 0.0
      %1007 = vmatprep.subr.mxu0 0.0
      %1008 = vmatpush2.msra.mxu0 0.0
      %1009 = vmatprep.mubr.f32.mxu0 0.0
      %1010 = vmatmul.mubr.f32.gmra.mxu0 %v943
      %v1011 = vpop.f32.mrf.mxu0
      %v1012 = vadd.f32 0.0, %v1011
      %v1013 = vpop.f32.mrf.mxu0
      %v1014 = vadd.f32 0.0, %v1013
      %1015 = vdwg.mxu0
      %v1018 = vcombine.low %v1012, %v1014
      %1020 = vst [vmem:[#allocation2 + $0x4] sm:$0xff] %v1018
      %v1021 = vld [vmem:[#allocation2] sm:$0xff]
      %v1022 = vld [vmem:[#allocation2 + $0x8] sm:$0xf]
      %s1023 = scalar_lea.vmem %s2, 36
      %v1024 = vld [vmem:[%s1023] sm:$0x3]
      %v1026 = vlaneseq
      %v1027 = vshrl.u32 %v1026, 7
      %v1028 = vsub.s32 0, %v1027
      %v1029 = vrot.slane %v1024, %v1028
      %v1030 = vlaneseq
      %v1031 = vshrl.u32 %v1030, 7
      %v1032 = vsub.s32 1, %v1031
      %v1033 = vrot.slane %v1024, %v1032
      %v1034 = vcombine.low %v1029, %v1033
      %1035 = vrot.lane.b32.xlu0 %v1034, 43
      %v1036 = vpop.permute.xlu0 %1035
      %v1037 = vrot.slane %v1036, 4
      %vm1038 = vcmask 351232
      %v1039 = vsel %vm1038, %v1037, %v1036
      %v1042 = vmul.f32 %v1021, %v1039
      %v1043 = vmul.f32 %v1022, %v1037
      %v1046 = vcombine.high %v1042, %v1042
      %1047 = vrot.lane.b32.xlu0 %v1042, 85
      %v1048 = vpop.permute.xlu0 %1047
      %1049 = vrot.lane.b32.xlu0 %v1046, 85
      %v1050 = vpop.permute.xlu0 %1049
      %1051 = vrot.lane.b32.xlu0 %v1043, 85
      %v1052 = vpop.permute.xlu0 %1051
      %vm1053 = vcmask 695296
      %v1054 = vsel %vm1053, %v1048, %v1050
      %v1055 = vsel %vm1053, %v1050, %v1052
      %1058 = vst [vmem:[#allocation3] sm:$0xf] %v1054
      %1059 = vst [vmem:[#allocation3 + $0x8] sm:$0xf] %v1055
      %v1060 = vld [vmem:[#allocation2] sm:$0xff]
      %v1061 = vld [vmem:[#allocation2 + $0x8] sm:$0xf]
      %s1062 = scalar_lea.vmem %s2, 38
      %v1063 = vld [vmem:[%s1062] sm:$0x3]
      %v1065 = vlaneseq
      %v1066 = vshrl.u32 %v1065, 7
      %v1067 = vsub.s32 0, %v1066
      %v1068 = vrot.slane %v1063, %v1067
      %v1069 = vlaneseq
      %v1070 = vshrl.u32 %v1069, 7
      %v1071 = vsub.s32 1, %v1070
      %v1072 = vrot.slane %v1063, %v1071
      %v1073 = vcombine.low %v1068, %v1072
      %1074 = vrot.lane.b32.xlu0 %v1073, 48
      %v1075 = vpop.permute.xlu0 %1074
      %v1076 = vrot.slane %v1075, 4
      %vm1077 = vcmask 392192
      %v1078 = vsel %vm1077, %v1076, %v1075
      %v1081 = vmul.f32 %v1060, %v1078
      %v1082 = vmul.f32 %v1061, %v1076
      %v1085 = vcombine.low %v1081, %v1081
      %v1086 = vcombine.low %v1082, %v1082
      %1087 = vrot.lane.b32.xlu0 %v1085, 80
      %v1088 = vpop.permute.xlu0 %1087
      %1089 = vrot.lane.b32.xlu0 %v1081, 80
      %v1090 = vpop.permute.xlu0 %1089
      %1091 = vrot.lane.b32.xlu0 %v1086, 80
      %v1092 = vpop.permute.xlu0 %1091
      %vm1093 = vcmask 654336
      %v1094 = vsel %vm1093, %v1088, %v1090
      %v1095 = vsel %vm1093, %v1090, %v1092
      %1098 = vst [vmem:[#allocation3] sm:$0xf0] %v1094
      %1099 = vst [vmem:[#allocation3 + $0x8] sm:$0xf0] %v1095
      %v1100 = vld [vmem:[#allocation2] sm:$0xff]
      %v1101 = vld [vmem:[#allocation2 + $0x8] sm:$0xf]
      %s1102 = scalar_lea.vmem %s2, 40
      %v1103 = vld [vmem:[%s1102] sm:$0x3]
      %v1105 = vlaneseq
      %v1106 = vshrl.u32 %v1105, 7
      %v1107 = vsub.s32 0, %v1106
      %v1108 = vrot.slane %v1103, %v1107
      %v1109 = vlaneseq
      %v1110 = vshrl.u32 %v1109, 7
      %v1111 = vsub.s32 1, %v1110
      %v1112 = vrot.slane %v1103, %v1111
      %v1113 = vcombine.low %v1108, %v1112
      %1114 = vrot.lane.b32.xlu0 %v1113, 53
      %v1115 = vpop.permute.xlu0 %1114
      %v1116 = vrot.slane %v1115, 4
      %vm1117 = vcmask 433152
      %v1118 = vsel %vm1117, %v1116, %v1115
      %v1121 = vmul.f32 %v1100, %v1118
      %v1122 = vmul.f32 %v1101, %v1116
      %v1125 = vcombine.high %v1121, %v1121
      %1126 = vrot.lane.b32.xlu0 %v1121, 75
      %v1127 = vpop.permute.xlu0 %1126
      %1128 = vrot.lane.b32.xlu0 %v1125, 75
      %v1129 = vpop.permute.xlu0 %1128
      %1130 = vrot.lane.b32.xlu0 %v1122, 75
      %v1131 = vpop.permute.xlu0 %1130
      %vm1132 = vcmask 613376
      %v1133 = vsel %vm1132, %v1127, %v1129
      %v1134 = vsel %vm1132, %v1129, %v1131
      %1137 = vst [vmem:[#allocation3 + $0x10] sm:$0xf] %v1133
      %1138 = vst [vmem:[#allocation3 + $0x18] sm:$0xf] %v1134
      %v1139 = vld [vmem:[#allocation2] sm:$0xff]
      %v1140 = vld [vmem:[#allocation2 + $0x8] sm:$0xf]
      %s1141 = scalar_lea.vmem %s2, 42
      %v1142 = vld [vmem:[%s1141] sm:$0x3]
      %v1144 = vlaneseq
      %v1145 = vshrl.u32 %v1144, 7
      %v1146 = vsub.s32 0, %v1145
      %v1147 = vrot.slane %v1142, %v1146
      %v1148 = vlaneseq
      %v1149 = vshrl.u32 %v1148, 7
      %v1150 = vsub.s32 1, %v1149
      %v1151 = vrot.slane %v1142, %v1150
      %v1152 = vcombine.low %v1147, %v1151
      %1153 = vrot.lane.b32.xlu0 %v1152, 123
      %v1154 = vpop.permute.xlu0 %1153
      %v1155 = vrot.slane %v1154, 4
      %vm1156 = vcmask 1006592
      %v1157 = vsel %vm1156, %v1155, %v1154
      %v1160 = vmul.f32 %v1139, %v1157
      %v1161 = vmul.f32 %v1140, %v1155
      %v1164 = vcombine.low %v1160, %v1160
      %v1165 = vcombine.low %v1161, %v1161
      %1166 = vrot.lane.b32.xlu0 %v1164, 5
      %v1167 = vpop.permute.xlu0 %1166
      %1168 = vrot.lane.b32.xlu0 %v1160, 5
      %v1169 = vpop.permute.xlu0 %1168
      %1170 = vrot.lane.b32.xlu0 %v1165, 5
      %v1171 = vpop.permute.xlu0 %1170
      %vm1172 = vcmask 39936
      %v1173 = vsel %vm1172, %v1167, %v1169
      %v1174 = vsel %vm1172, %v1169, %v1171
      %1177 = vst [vmem:[#allocation3 + $0x10] sm:$0xf0] %v1173
      %1178 = vst [vmem:[#allocation3 + $0x18] sm:$0xf0] %v1174
      %v1179 = vld [vmem:[#allocation2 + $0x4] sm:$0xff]
      %s1180 = scalar_lea.vmem %s2, 44
      %v1181 = vld [vmem:[%s1180] sm:$0x3]
      %v1183 = vlaneseq
      %v1184 = vshrl.u32 %v1183, 7
      %v1185 = vsub.s32 0, %v1184
      %v1186 = vrot.slane %v1181, %v1185
      %v1187 = vlaneseq
      %v1188 = vshrl.u32 %v1187, 7
      %v1189 = vsub.s32 1, %v1188
      %v1190 = vrot.slane %v1181, %v1189
      %v1191 = vcombine.low %v1186, %v1190
      %v1193 = vmul.f32 %v1179, %v1191
      %v1195 = vcombine.high %v1193, %v1193
      %1197 = vst [vmem:[#allocation3 + $0x20] sm:$0xf] %v1193
      %1198 = vst [vmem:[#allocation3 + $0x28] sm:$0xf] %v1195
      %v1199 = vld [vmem:[#allocation2 + $0x4] sm:$0xff]
      %v1200 = vld [vmem:[#allocation2 + $0xc] sm:$0xf]
      %s1201 = scalar_lea.vmem %s2, 46
      %v1202 = vld [vmem:[%s1201] sm:$0x3]
      %v1204 = vlaneseq
      %v1205 = vshrl.u32 %v1204, 7
      %v1206 = vsub.s32 0, %v1205
      %v1207 = vrot.slane %v1202, %v1206
      %v1208 = vlaneseq
      %v1209 = vshrl.u32 %v1208, 7
      %v1210 = vsub.s32 1, %v1209
      %v1211 = vrot.slane %v1202, %v1210
      %v1212 = vcombine.low %v1207, %v1211
      %1213 = vrot.lane.b32.xlu0 %v1212, 5
      %v1214 = vpop.permute.xlu0 %1213
      %v1215 = vrot.slane %v1214, 4
      %v1216 = vsel %vm1172, %v1215, %v1214
      %v1219 = vmul.f32 %v1199, %v1216
      %v1220 = vmul.f32 %v1200, %v1215
      %v1223 = vcombine.low %v1219, %v1219
      %v1224 = vcombine.low %v1220, %v1220
      %1225 = vrot.lane.b32.xlu0 %v1223, 123
      %v1226 = vpop.permute.xlu0 %1225
      %1227 = vrot.lane.b32.xlu0 %v1219, 123
      %v1228 = vpop.permute.xlu0 %1227
      %1229 = vrot.lane.b32.xlu0 %v1224, 123
      %v1230 = vpop.permute.xlu0 %1229
      %v1231 = vsel %vm1156, %v1226, %v1228
      %v1232 = vsel %vm1156, %v1228, %v1230
      %1235 = vst [vmem:[#allocation3 + $0x20] sm:$0xf0] %v1231
      %1236 = vst [vmem:[#allocation3 + $0x28] sm:$0xf0] %v1232
      %v1237 = vld [vmem:[#allocation2 + $0x4] sm:$0xff]
      %v1238 = vld [vmem:[#allocation2 + $0xc] sm:$0xf]
      %s1239 = scalar_lea.vmem %s2, 48
      %v1240 = vld [vmem:[%s1239] sm:$0x3]
      %v1242 = vlaneseq
      %v1243 = vshrl.u32 %v1242, 7
      %v1244 = vsub.s32 0, %v1243
      %v1245 = vrot.slane %v1240, %v1244
      %v1246 = vlaneseq
      %v1247 = vshrl.u32 %v1246, 7
      %v1248 = vsub.s32 1, %v1247
      %v1249 = vrot.slane %v1240, %v1248
      %v1250 = vcombine.low %v1245, %v1249
      %1251 = vrot.lane.b32.xlu0 %v1250, 75
      %v1252 = vpop.permute.xlu0 %1251
      %v1253 = vrot.slane %v1252, 4
      %v1254 = vsel %vm1132, %v1253, %v1252
      %v1257 = vmul.f32 %v1237, %v1254
      %v1258 = vmul.f32 %v1238, %v1253
      %v1261 = vcombine.high %v1257, %v1257
      %1262 = vrot.lane.b32.xlu0 %v1257, 53
      %v1263 = vpop.permute.xlu0 %1262
      %1264 = vrot.lane.b32.xlu0 %v1261, 53
      %v1265 = vpop.permute.xlu0 %1264
      %1266 = vrot.lane.b32.xlu0 %v1258, 53
      %v1267 = vpop.permute.xlu0 %1266
      %v1268 = vsel %vm1117, %v1263, %v1265
      %v1269 = vsel %vm1117, %v1265, %v1267
      %1272 = vst [vmem:[#allocation3 + $0x30] sm:$0xf] %v1268
      %1273 = vst [vmem:[#allocation3 + $0x38] sm:$0xf] %v1269
      %v1274 = vld [vmem:[#allocation2 + $0x4] sm:$0xff]
      %v1275 = vld [vmem:[#allocation2 + $0xc] sm:$0xf]
      %s1276 = scalar_lea.vmem %s2, 50
      %v1277 = vld [vmem:[%s1276] sm:$0x3]
      %v1279 = vlaneseq
      %v1280 = vshrl.u32 %v1279, 7
      %v1281 = vsub.s32 0, %v1280
      %v1282 = vrot.slane %v1277, %v1281
      %v1283 = vlaneseq
      %v1284 = vshrl.u32 %v1283, 7
      %v1285 = vsub.s32 1, %v1284
      %v1286 = vrot.slane %v1277, %v1285
      %v1287 = vcombine.low %v1282, %v1286
      %1288 = vrot.lane.b32.xlu0 %v1287, 80
      %v1289 = vpop.permute.xlu0 %1288
      %v1290 = vrot.slane %v1289, 4
      %v1291 = vsel %vm1093, %v1290, %v1289
      %v1294 = vmul.f32 %v1274, %v1291
      %v1295 = vmul.f32 %v1275, %v1290
      %v1298 = vcombine.low %v1294, %v1294
      %v1299 = vcombine.low %v1295, %v1295
      %1300 = vrot.lane.b32.xlu0 %v1298, 48
      %v1301 = vpop.permute.xlu0 %1300
      %1302 = vrot.lane.b32.xlu0 %v1294, 48
      %v1303 = vpop.permute.xlu0 %1302
      %1304 = vrot.lane.b32.xlu0 %v1299, 48
      %v1305 = vpop.permute.xlu0 %1304
      %v1306 = vsel %vm1077, %v1301, %v1303
      %v1307 = vsel %vm1077, %v1303, %v1305
      %1310 = vst [vmem:[#allocation3 + $0x30] sm:$0xf0] %v1306
      %1311 = vst [vmem:[#allocation3 + $0x38] sm:$0xf0] %v1307
      %v1312 = vld [vmem:[#allocation2 + $0x4] sm:$0xff]
      %v1313 = vld [vmem:[#allocation2 + $0xc] sm:$0xf]
      %s1314 = scalar_lea.vmem %s2, 52
      %v1315 = vld [vmem:[%s1314] sm:$0x3]
      %v1317 = vlaneseq
      %v1318 = vshrl.u32 %v1317, 7
      %v1319 = vsub.s32 0, %v1318
      %v1320 = vrot.slane %v1315, %v1319
      %v1321 = vlaneseq
      %v1322 = vshrl.u32 %v1321, 7
      %v1323 = vsub.s32 1, %v1322
      %v1324 = vrot.slane %v1315, %v1323
      %v1325 = vcombine.low %v1320, %v1324
      %1326 = vrot.lane.b32.xlu0 %v1325, 85
      %v1327 = vpop.permute.xlu0 %1326
      %v1328 = vrot.slane %v1327, 4
      %v1329 = vsel %vm1053, %v1328, %v1327
      %v1332 = vmul.f32 %v1312, %v1329
      %v1333 = vmul.f32 %v1313, %v1328
      %v1336 = vcombine.high %v1332, %v1332
      %1337 = vrot.lane.b32.xlu0 %v1332, 43
      %v1338 = vpop.permute.xlu0 %1337
      %1339 = vrot.lane.b32.xlu0 %v1336, 43
      %v1340 = vpop.permute.xlu0 %1339
      %1341 = vrot.lane.b32.xlu0 %v1333, 43
      %v1342 = vpop.permute.xlu0 %1341
      %v1343 = vsel %vm1038, %v1338, %v1340
      %v1344 = vsel %vm1038, %v1340, %v1342
      %1347 = vst [vmem:[#allocation3 + $0x40] sm:$0xf] %v1343
      %1348 = vst [vmem:[#allocation3 + $0x48] sm:$0xf] %v1344
      %s1349 = scalar_lea.vmem %s1, 8
      %v1350 = vld [vmem:[%s1349] sm:$0xf]
      %v1351 = vld [vmem:[#allocation3] sm:$0xff]
      %v1352 = vld [vmem:[#allocation3 + $0x8] sm:$0xff]
      %v1353 = vld [vmem:[#allocation3 + $0x10] sm:$0xff]
      %v1354 = vld [vmem:[#allocation3 + $0x18] sm:$0xff]
      %v1355 = vld [vmem:[#allocation3 + $0x20] sm:$0xff]
      %v1356 = vld [vmem:[#allocation3 + $0x28] sm:$0xff]
      %v1357 = vld [vmem:[#allocation3 + $0x30] sm:$0xff]
      %v1358 = vld [vmem:[#allocation3 + $0x38] sm:$0xff]
      %v1359 = vld [vmem:[#allocation3 + $0x40] sm:$0xff]
      %v1360 = vld [vmem:[#allocation3 + $0x48] sm:$0xff]
      %v1362 = vsel %vm522, %v1350, 0
      %1364 = vmatprep.subr.mxu0 0.0
      %1365 = vmatpush1.msra.mxu0 0.0
      %1366 = vmatprep.subr.mxu0 0.0
      %1367 = vmatpush1.msra.mxu0 0.0
      %1368 = vmatprep.subr.mxu0 0.0
      %1369 = vmatpush1.msra.mxu0 0.0
      %1370 = vmatprep.subr.mxu0 0.0
      %1371 = vmatpush1.msra.mxu0 0.0
      %1372 = vmatprep.subr.mxu0 0.0
      %1373 = vmatpush1.msra.mxu0 0.0
      %1374 = vmatprep.subr.mxu0 0.0
      %1375 = vmatpush1.msra.mxu0 0.0
      %1376 = vmatprep.subr.mxu0 0.0
      %1377 = vmatpush1.msra.mxu0 0.0
      %1378 = vmatprep.subr.mxu0 0.0
      %1379 = vmatpush1.msra.mxu0 0.0
      %1380 = vmatprep.subr.mxu0 0.0
      %1381 = vmatpush1.msra.mxu0 0.0
      %1382 = vmatprep.subr.mxu0 0.0
      %1383 = vmatpush1.msra.mxu0 0.0
      %1384 = vmatprep.subr.mxu0 0.0
      %1385 = vmatpush1.msra.mxu0 0.0
      %1386 = vmatprep.subr.mxu0 %v1360
      %1387 = vmatpush1.msra.mxu0 %v1359
      %1388 = vmatprep.subr.mxu0 %v1358
      %1389 = vmatpush1.msra.mxu0 %v1357
      %1390 = vmatprep.subr.mxu0 %v1356
      %1391 = vmatpush1.msra.mxu0 %v1355
      %1392 = vmatprep.subr.mxu0 %v1354
      %1393 = vmatpush1.msra.mxu0 %v1353
      %1394 = vmatprep.subr.mxu0 %v1352
      %1395 = vmatpush1.msra.mxu0 %v1351
      %1396 = vmatprep.subr.mxu0 0.0
      %1397 = vmatpush2.msra.mxu0 0.0
      %1398 = vmatprep.subr.mxu0 0.0
      %1399 = vmatpush2.msra.mxu0 0.0
      %1400 = vmatprep.subr.mxu0 0.0
      %1401 = vmatpush2.msra.mxu0 0.0
      %1402 = vmatprep.subr.mxu0 0.0
      %1403 = vmatpush2.msra.mxu0 0.0
      %1404 = vmatprep.subr.mxu0 0.0
      %1405 = vmatpush2.msra.mxu0 0.0
      %1406 = vmatprep.subr.mxu0 0.0
      %1407 = vmatpush2.msra.mxu0 0.0
      %1408 = vmatprep.subr.mxu0 0.0
      %1409 = vmatpush2.msra.mxu0 0.0
      %1410 = vmatprep.subr.mxu0 0.0
      %1411 = vmatpush2.msra.mxu0 0.0
      %1412 = vmatprep.subr.mxu0 0.0
      %1413 = vmatpush2.msra.mxu0 0.0
      %1414 = vmatprep.subr.mxu0 0.0
      %1415 = vmatpush2.msra.mxu0 0.0
      %1416 = vmatprep.subr.mxu0 0.0
      %1417 = vmatpush2.msra.mxu0 0.0
      %1418 = vmatprep.subr.mxu0 0.0
      %1419 = vmatpush2.msra.mxu0 0.0
      %1420 = vmatprep.subr.mxu0 0.0
      %1421 = vmatpush2.msra.mxu0 0.0
      %1422 = vmatprep.subr.mxu0 0.0
      %1423 = vmatpush2.msra.mxu0 0.0
      %1424 = vmatprep.subr.mxu0 0.0
      %1425 = vmatpush2.msra.mxu0 0.0
      %1426 = vmatprep.subr.mxu0 0.0
      %1427 = vmatpush2.msra.mxu0 0.0
      %1428 = vmatprep.mubr.f32.mxu0 0.0
      %1429 = vmatmul.mubr.f32.gmra.mxu0 %v1362
      %v1430 = vpop.f32.mrf.mxu0
      %v1431 = vadd.f32 0.0, %v1430
      %v1432 = vpop.f32.mrf.mxu0
      %v1433 = vadd.f32 0.0, %v1432
      %1434 = vdwg.mxu0
      %v1437 = vcombine.low %v1431, %v1433
      %v1439 = vadd.f32 %v182, %v1437
      %1440 = vst [vmem:[%s170] sm:$0xff] %v1439
      %p1441 = scmp.lt.s32.totalorder %s14, 1
      %s1442 = scalar_select %p1441, %s14, 1
      %s1443 = smul.addr %s1442, 2
      %s1444 = smul.addr %s1443, 4
      %s1445 = scalar_lea.vmem %s3, %s1444
      // Predicated region
      $region33: #{three_layer_dilated_conv_net.1} parent=31 // pred_check
        %p1446 = pneg %p100
      $region34: #{three_layer_dilated_conv_net.1} parent=31 // pred_check_branch
        %1448 = sbr.rel (%p1446) target = $region36
      $region35: #{three_layer_dilated_conv_net.1} parent=31 // pred_region
        _
      $region36: #{three_layer_dilated_conv_net.1} parent=31 // pred_fallthru
        _
    $region32: #{three_layer_dilated_conv_net.1} parent=5 // pred_fallthru
      _
    %p1449 = scmp.le.s32.totalorder 2, %s9
    // Predicated region
    $region37: #{three_layer_dilated_conv_net.1} parent=5 // pred_check
      %p1450 = pneg %p1449
    $region38: #{three_layer_dilated_conv_net.1} parent=5 // pred_check_branch
      %1452 = sbr.rel (%p1450) target = $region40
    $region39: #{three_layer_dilated_conv_net.1} parent=5 // pred_region
      %s1453 = ssub.s32 %s9, 2
      // Predicated region
      $region41: #{three_layer_dilated_conv_net.1} parent=39 // pred_check
        %p1454 = pneg %p106
      $region42: #{three_layer_dilated_conv_net.1} parent=39 // pred_check_branch
        %1456 = sbr.rel (%p1454) target = $region44
      $region43: #{three_layer_dilated_conv_net.1} parent=39 // pred_region
        %p1457 = scmp.lt.s32.totalorder %s15, 1
        %s1458 = scalar_select %p1457, %s15, 1
        %s1459 = smul.addr %s1458, 2
        %s1460 = smul.addr %s1459, 4
        %s1461 = scalar_lea.vmem %s3, %s1460
      $region44: #{three_layer_dilated_conv_net.1} parent=39 // pred_fallthru
        _
    $region40: #{three_layer_dilated_conv_net.1} parent=5 // pred_fallthru
      _
  $region6: #{three_layer_dilated_conv_net.1} parent=0 // loop_footer
    %s13 = sadd.s32 1, %s9
  $region7: #{three_layer_dilated_conv_net.1} parent=0 // loop_footer_branch
    %8 = sbr.rel target = $region3
  $region8: #{three_layer_dilated_conv_net.1} parent=0 // loop_exit
    _

</llo_original>
